<compile_context>
chip_gen: v5e
topology: v5e:2x2
jax: 0.10.0
libtpu: 0.0.40
codegen_flags: <defaults>
</compile_context>

<pallas_src>
import functools

import jax
import jax.numpy as jnp
import numpy as np
from jax.experimental import pallas as pl
from jax.experimental.pallas import tpu as pltpu

MODALS = 3            # RGB, NI, TI
PARTS = 4             # pcb_p4 -> 4 horizontal parts
FEAT = 32             # surrogate backbone feature channels
RED = 256             # PCB reduced part dim (classifier input is 256)
NUM_CLASSES = 16
G = MODALS * PARTS    # 12 (modality, part) groups
GRID_SPLIT = 2        # grid steps over the group axis (must divide G)


def _feature_slab(x_ref, wbb_ref, wred_ref, bred_ref, gb, b, s):
    """Compute the (gb, b, RED) part embeddings for one block of groups."""
    # Surrogate backbone 1x1 conv + ReLU, batched over all (modality, part)
    # groups in one MXU call (bf16 operands, f32 accumulation).
    h = jnp.einsum('gnc,gcf->gnf', x_ref[...], wbb_ref[...],
                   preferred_element_type=jnp.float32)
    h = jnp.maximum(h, 0.0)                                   # (gb, b*s, FEAT) f32
    # PCB part pooling: sum over stripe positions (1/S is folded into wred).
    pooled = jnp.sum(h.reshape(gb * b, s, FEAT), axis=1)      # (gb*b, FEAT) f32
    pooled = pooled.reshape(gb, b, FEAT).astype(jnp.bfloat16)
    # 256-d reduction + ReLU, grouped over G (no block-diag zeros).
    e = jnp.einsum('gbf,gfr->gbr', pooled, wred_ref[...],
                   preferred_element_type=jnp.float32)
    return jnp.maximum(e + bred_ref[...], 0.0)                # (gb, b, RED) f32


def _eval_kernel(x_ref, wbb_ref, wred_ref, bred_ref, feat_ref, *, gb, b, s):
    feat_ref[...] = _feature_slab(x_ref, wbb_ref, wred_ref, bred_ref,
                                  gb, b, s).astype(feat_ref.dtype)


def _train_kernel(x_ref, wbb_ref, wred_ref, bred_ref, wcls_ref, bcls_ref,
                  logit_ref, *, gb, b, s):
    e = _feature_slab(x_ref, wbb_ref, wred_ref, bred_ref, gb, b, s)
    # 12 Linear(256, num_classes) classifiers as one grouped matmul.
    logits = jnp.einsum('gbr,grn->gbn', e.astype(jnp.bfloat16), wcls_ref[...],
                        preferred_element_type=jnp.float32)
    logit_ref[...] = (logits + bcls_ref[...]).astype(logit_ref.dtype)


def make_params(key, C):
    kbb, kred, kcls = jax.random.split(key, 3)
    wbb = jax.random.normal(kbb, (MODALS, C, FEAT), jnp.float32) * 0.1
    wred = jax.random.normal(kred, (G, FEAT, RED), jnp.float32) * 0.05
    bred = jnp.zeros((G, 1, RED), jnp.float32)
    wcls = jax.random.normal(kcls, (G, RED, NUM_CLASSES), jnp.float32) * 0.02
    bcls = jnp.zeros((G, 1, NUM_CLASSES), jnp.float32)
    return dict(wbb=wbb, wred=wred, bred=bred, wcls=wcls, bcls=bcls)


def pcb3modal_forward(x, params, training=True):
    """x: (3, B, C, H, W) stacked (RGB, NI, TI) in NCHW (PyTorch convention)."""
    M, B, C, H, W = x.shape
    assert M == MODALS and H % PARTS == 0 and G % GRID_SPLIT == 0
    hp = H // PARTS
    S = hp * W
    GB = G // GRID_SPLIT

    # Single layout pass: NCHW -> group-major channels-last stripes.
    # Group index g = m*PARTS + p; row index n = b*S + stripe_position.  Only
    # the transpose moves data (same class of pass as NCHW -> NHWC).
    x6 = x.reshape(M, B, C, PARTS, hp, W)
    x6 = jnp.transpose(x6, (0, 3, 1, 4, 5, 2))            # (M, PARTS, B, hp, W, C)
    x_g = x6.reshape(G, B * S, C).astype(jnp.bfloat16)

    # Grouped weights (no block-diag zero padding).  1/S mean-pool scale is
    # folded into wred; matmul operands are bf16 (MXU-native on all
    # generations), biases stay f32 for the VPU post-ops.
    wbb_g = jnp.repeat(params['wbb'], PARTS, axis=0).astype(jnp.bfloat16)  # (G,C,FEAT)
    wred = (params['wred'] / S).astype(jnp.bfloat16)                       # (G,FEAT,RED)
    bred = params['bred'].astype(jnp.float32)                              # (G,1,RED)

    common_specs = [
        pl.BlockSpec((GB, B * S, C), lambda i: (i, 0, 0)),
        pl.BlockSpec((GB, C, FEAT), lambda i: (i, 0, 0)),
        pl.BlockSpec((GB, FEAT, RED), lambda i: (i, 0, 0)),
        pl.BlockSpec((GB, 1, RED), lambda i: (i, 0, 0)),
    ]
    cparams = pltpu.CompilerParams(dimension_semantics=("parallel",))

    if training:
        wcls = params['wcls'].astype(jnp.bfloat16)         # (G, RED, NC)
        bcls = params['bcls'].astype(jnp.float32)          # (G, 1, NC)
        logits = pl.pallas_call(
            functools.partial(_train_kernel, gb=GB, b=B, s=S),
            out_shape=jax.ShapeDtypeStruct((G, B, NUM_CLASSES), jnp.float32),
            grid=(GRID_SPLIT,),
            in_specs=common_specs + [
                pl.BlockSpec((GB, RED, NUM_CLASSES), lambda i: (i, 0, 0)),
                pl.BlockSpec((GB, 1, NUM_CLASSES), lambda i: (i, 0, 0)),
            ],
            out_specs=pl.BlockSpec((GB, B, NUM_CLASSES), lambda i: (i, 0, 0)),
            compiler_params=cparams,
        )(x_g, wbb_g, wred, bred, wcls, bcls)
        # training order: [RGB_p, NI_p, TI_p for p in range(4)], each (B, NC)
        lg = logits.reshape(MODALS, PARTS, B, NUM_CLASSES)
        return [lg[m, p] for p in range(PARTS) for m in range(MODALS)]

    feats = pl.pallas_call(
        functools.partial(_eval_kernel, gb=GB, b=B, s=S),
        out_shape=jax.ShapeDtypeStruct((G, B, RED), jnp.float32),
        grid=(GRID_SPLIT,),
        in_specs=common_specs,
        out_specs=pl.BlockSpec((GB, B, RED), lambda i: (i, 0, 0)),
        compiler_params=cparams,
    )(x_g, wbb_g, wred, bred)
    # eval: torch.cat([fc_TI, fc_RGB, fc_NI], dim=1); fc_m is that modality's
    # 4 part embeddings concatenated -> (B, PARTS*RED).  The 24 KB reorder is
    # done outside the kernel with plain XLA ops.
    f = feats.reshape(MODALS, PARTS, B, RED)
    fc = lambda m: jnp.transpose(f[m], (1, 0, 2)).reshape(B, PARTS * RED)
    return jnp.concatenate([fc(2), fc(0), fc(1)], axis=1)


def _reference(x, params, training):
    """Pure-JAX reference of the same forward (for correctness checking)."""
    M, B, C, H, W = x.shape
    hp = H // PARTS
    S = hp * W
    feats, logits = [], []          # index g = m*PARTS + p
    for m in range(MODALS):
        xm = jnp.transpose(x[m], (0, 2, 3, 1))                     # (B,H,W,C)
        h = jnp.maximum(jnp.einsum('bhwc,cf->bhwf', xm, params['wbb'][m]), 0.0)
        h = h.reshape(B, PARTS, S, FEAT)
        pooled = jnp.mean(h, axis=2)                               # (B,PARTS,FEAT)
        for p in range(PARTS):
            g = m * PARTS + p
            e = jnp.maximum(pooled[:, p] @ params['wred'][g] + params['bred'][g], 0.0)
            feats.append(e)
            logits.append(e @ params['wcls'][g] + params['bcls'][g])
    if not training:
        fc = lambda m: jnp.concatenate(
            [feats[m * PARTS + p] for p in range(PARTS)], axis=1)
        return jnp.concatenate([fc(2), fc(0), fc(1)], axis=1)
    out = []
    for p in range(PARTS):
        for m in range(MODALS):
            out.append(logits[m * PARTS + p])
    return out


if __name__ == "__main__":
    key = jax.random.PRNGKey(0)
    kx, kp = jax.random.split(key)

    B, C, H, W = 2, 4, 16, 16
    x = jax.random.normal(kx, (MODALS, B, C, H, W), jnp.float32)
    params = make_params(kp, C)

    # training path: 12 logit tensors (4 parts x 3 modalities), each (B, NC)
    train_out = pcb3modal_forward(x, params, training=True)
    train_out = [jax.block_until_ready(t) for t in train_out]
    assert len(train_out) == 12
    assert all(t.shape == (B, NUM_CLASSES) for t in train_out)

    # eval path: cat([TI, RGB, NI], dim=1) -> (B, 3 * PARTS * RED)
    eval_out = jax.block_until_ready(
        pcb3modal_forward(x, params, training=False))
    assert eval_out.shape == (B, MODALS * PARTS * RED)

    # correctness vs pure-JAX reference
    with jax.default_matmul_precision('highest'):
        ref_train = _reference(x, params, training=True)
        ref_eval = _reference(x, params, training=False)
    for got, ref in zip(train_out, ref_train):
        np.testing.assert_allclose(np.asarray(got), np.asarray(ref),
                                   rtol=2e-2, atol=2e-3)
    np.testing.assert_allclose(np.asarray(eval_out), np.asarray(ref_eval),
                               rtol=2e-2, atol=2e-3)

    print("KERNEL_OK")
</pallas_src>

<mosaic_0001>
module attributes {stable_mosaic.version = 11 : i64} {
  func.func @_train_kernel(%arg0: i32, %arg1: memref<6x128x4xbf16, #tpu.memory_space<vmem>>, %arg2: memref<6x4x32xbf16, #tpu.memory_space<vmem>>, %arg3: memref<6x32x256xbf16, #tpu.memory_space<vmem>>, %arg4: memref<6x1x256xf32, #tpu.memory_space<vmem>>, %arg5: memref<6x256x16xbf16, #tpu.memory_space<vmem>>, %arg6: memref<6x1x16xf32, #tpu.memory_space<vmem>>, %arg7: memref<6x2x16xf32, #tpu.memory_space<vmem>>) attributes {dimension_semantics = [#tpu.dimension_semantics<parallel>], iteration_bounds = array<i64: 2>, scalar_prefetch = 0 : i64, scratch_operands = 0 : i64, tpu.core_type = #tpu.core_type<tc>, window_params = [{transform_indices = @transform_0, window_bounds = array<i64: 6, 128, 4>}, {transform_indices = @transform_1, window_bounds = array<i64: 6, 4, 32>}, {transform_indices = @transform_2, window_bounds = array<i64: 6, 32, 256>}, {transform_indices = @transform_3, window_bounds = array<i64: 6, 1, 256>}, {transform_indices = @transform_4, window_bounds = array<i64: 6, 256, 16>}, {transform_indices = @transform_5, window_bounds = array<i64: 6, 1, 16>}, {transform_indices = @transform_6, window_bounds = array<i64: 6, 2, 16>}]} {
    %c0 = arith.constant 0 : index
    %c0_0 = arith.constant 0 : index
    %c0_1 = arith.constant 0 : index
    %0 = vector.load %arg1[%c0, %c0_0, %c0_1] : memref<6x128x4xbf16, #tpu.memory_space<vmem>>, vector<6x128x4xbf16>
    %c0_2 = arith.constant 0 : index
    %c0_3 = arith.constant 0 : index
    %c0_4 = arith.constant 0 : index
    %1 = vector.load %arg2[%c0_2, %c0_3, %c0_4] : memref<6x4x32xbf16, #tpu.memory_space<vmem>>, vector<6x4x32xbf16>
    "tpu.trace_start"() <{level = 10 : i32, message = "gnc,gcf->gnf"}> : () -> ()
    %cst = arith.constant dense<0.000000e+00> : vector<6x128x32xf32>
    %2 = tpu.matmul %0, %1, %cst {dimension_numbers = #tpu.dot_dimension_numbers<[2], [1], [1], [2], [0, 0, 0, 1, 1, 2], [0], [0]>} : vector<6x128x4xbf16>, vector<6x4x32xbf16>, vector<6x128x32xf32> -> vector<6x128x32xf32>
    "tpu.trace_stop"() : () -> ()
    %cst_5 = arith.constant 0.000000e+00 : f32
    %3 = vector.broadcast %cst_5 : f32 to vector<6x128x32xf32>
    %4 = arith.maximumf %2, %3 : vector<6x128x32xf32>
    %5 = vector.shape_cast %4 : vector<6x128x32xf32> to vector<12x64x32xf32>
    %cst_6 = arith.constant dense<0.000000e+00> : vector<12x32xf32>
    %6 = vector.multi_reduction <add>, %5, %cst_6 [1] : vector<12x64x32xf32> to vector<12x32xf32>
    %7 = vector.shape_cast %6 : vector<12x32xf32> to vector<6x2x32xf32>
    %8 = arith.truncf %7 : vector<6x2x32xf32> to vector<6x2x32xbf16>
    %c0_7 = arith.constant 0 : index
    %c0_8 = arith.constant 0 : index
    %c0_9 = arith.constant 0 : index
    %9 = vector.load %arg3[%c0_7, %c0_8, %c0_9] : memref<6x32x256xbf16, #tpu.memory_space<vmem>>, vector<6x32x256xbf16>
    "tpu.trace_start"() <{level = 10 : i32, message = "gbf,gfr->gbr"}> : () -> ()
    %cst_10 = arith.constant dense<0.000000e+00> : vector<6x2x256xf32>
    %10 = tpu.matmul %8, %9, %cst_10 {dimension_numbers = #tpu.dot_dimension_numbers<[2], [1], [1], [2], [0, 0, 0, 1, 1, 2], [0], [0]>} : vector<6x2x32xbf16>, vector<6x32x256xbf16>, vector<6x2x256xf32> -> vector<6x2x256xf32>
    "tpu.trace_stop"() : () -> ()
    %c0_11 = arith.constant 0 : index
    %c0_12 = arith.constant 0 : index
    %c0_13 = arith.constant 0 : index
    %11 = vector.load %arg4[%c0_11, %c0_12, %c0_13] : memref<6x1x256xf32, #tpu.memory_space<vmem>>, vector<6x1x256xf32>
    %12 = vector.broadcast %11 : vector<6x1x256xf32> to vector<6x2x256xf32>
    %13 = arith.addf %10, %12 : vector<6x2x256xf32>
    %cst_14 = arith.constant 0.000000e+00 : f32
    %14 = vector.broadcast %cst_14 : f32 to vector<6x2x256xf32>
    %15 = arith.maximumf %13, %14 : vector<6x2x256xf32>
    %16 = arith.truncf %15 : vector<6x2x256xf32> to vector<6x2x256xbf16>
    %c0_15 = arith.constant 0 : index
    %c0_16 = arith.constant 0 : index
    %c0_17 = arith.constant 0 : index
    %17 = vector.load %arg5[%c0_15, %c0_16, %c0_17] : memref<6x256x16xbf16, #tpu.memory_space<vmem>>, vector<6x256x16xbf16>
    "tpu.trace_start"() <{level = 10 : i32, message = "gbr,grn->gbn"}> : () -> ()
    %cst_18 = arith.constant dense<0.000000e+00> : vector<6x2x16xf32>
    %18 = tpu.matmul %16, %17, %cst_18 {dimension_numbers = #tpu.dot_dimension_numbers<[2], [1], [1], [2], [0, 0, 0, 1, 1, 2], [0], [0]>} : vector<6x2x256xbf16>, vector<6x256x16xbf16>, vector<6x2x16xf32> -> vector<6x2x16xf32>
    "tpu.trace_stop"() : () -> ()
    %c0_19 = arith.constant 0 : index
    %c0_20 = arith.constant 0 : index
    %c0_21 = arith.constant 0 : index
    %19 = vector.load %arg6[%c0_19, %c0_20, %c0_21] : memref<6x1x16xf32, #tpu.memory_space<vmem>>, vector<6x1x16xf32>
    %20 = vector.broadcast %19 : vector<6x1x16xf32> to vector<6x2x16xf32>
    %21 = arith.addf %18, %20 : vector<6x2x16xf32>
    %c0_22 = arith.constant 0 : index
    %c0_23 = arith.constant 0 : index
    %c0_24 = arith.constant 0 : index
    %22 = vector.load %arg7[%c0_22, %c0_23, %c0_24] : memref<6x2x16xf32, #tpu.memory_space<vmem>>, vector<6x2x16xf32>
    tpu.vector_store %arg7[%c0_22, %c0_23, %c0_24], %21 {strides = array<i32>} : memref<6x2x16xf32, #tpu.memory_space<vmem>>, vector<6x2x16xf32>,
    return
  }
  func.func @transform_0(%arg0: i32) -> (i32, i32, i32) {
    %c0_i32 = arith.constant 0 : i32
    %c0_i32_0 = arith.constant 0 : i32
    %c0_i32_1 = arith.constant 0 : i32
    return %arg0, %c0_i32, %c0_i32_0 : i32, i32, i32
  }
  func.func @transform_1(%arg0: i32) -> (i32, i32, i32) {
    %c0_i32 = arith.constant 0 : i32
    %c0_i32_0 = arith.constant 0 : i32
    %c0_i32_1 = arith.constant 0 : i32
    return %arg0, %c0_i32, %c0_i32_0 : i32, i32, i32
  }
  func.func @transform_2(%arg0: i32) -> (i32, i32, i32) {
    %c0_i32 = arith.constant 0 : i32
    %c0_i32_0 = arith.constant 0 : i32
    %c0_i32_1 = arith.constant 0 : i32
    return %arg0, %c0_i32, %c0_i32_0 : i32, i32, i32
  }
  func.func @transform_3(%arg0: i32) -> (i32, i32, i32) {
    %c0_i32 = arith.constant 0 : i32
    %c0_i32_0 = arith.constant 0 : i32
    %c0_i32_1 = arith.constant 0 : i32
    return %arg0, %c0_i32, %c0_i32_0 : i32, i32, i32
  }
  func.func @transform_4(%arg0: i32) -> (i32, i32, i32) {
    %c0_i32 = arith.constant 0 : i32
    %c0_i32_0 = arith.constant 0 : i32
    %c0_i32_1 = arith.constant 0 : i32
    return %arg0, %c0_i32, %c0_i32_0 : i32, i32, i32
  }
  func.func @transform_5(%arg0: i32) -> (i32, i32, i32) {
    %c0_i32 = arith.constant 0 : i32
    %c0_i32_0 = arith.constant 0 : i32
    %c0_i32_1 = arith.constant 0 : i32
    return %arg0, %c0_i32, %c0_i32_0 : i32, i32, i32
  }
  func.func @transform_6(%arg0: i32) -> (i32, i32, i32) {
    %c0_i32 = arith.constant 0 : i32
    %c0_i32_0 = arith.constant 0 : i32
    %c0_i32_1 = arith.constant 0 : i32
    return %arg0, %c0_i32, %c0_i32_0 : i32, i32, i32
  }
}

</mosaic_0001>

<llo_original>
// kernel: tpu_custom_call.1
$region0: #{tpu_custom_call.1}
  #allocation0 [shape = 'u32[]', space=smem, size = 0x4, offset = 0x4, fixed_abs, tag = 'smem constant byte address 0x4 - core index']
  #allocation1 [shape = 'u32[72,128]{1,0:T(1,128)}', space=vmem, size = 0x9000, scoped, tag = 'internal scratch']
  %s0 = inlined_call_operand.vmem [shape: bf16[12,128,4], index: 0, kind: input, shape index: {}]
  %s1 = inlined_call_operand.vmem [shape: bf16[12,4,32], index: 1, kind: input, shape index: {}]
  %s2 = inlined_call_operand.vmem [shape: bf16[12,32,256], index: 2, kind: input, shape index: {}]
  %s3 = inlined_call_operand.vmem [shape: f32[12,1,256], index: 3, kind: input, shape index: {}]
  %s4 = inlined_call_operand.vmem [shape: bf16[12,256,16], index: 4, kind: input, shape index: {}]
  %s5 = inlined_call_operand.vmem [shape: f32[12,1,16], index: 5, kind: input, shape index: {}]
  %s6 = inlined_call_operand.hbm [shape: f32[12,2,16], index: 6, kind: output, shape index: {}]
  %s7 = sld [smem:[#allocation0]]
  $region57: #{tpu_custom_call.1} parent=0
    _
  %s9 = ssub.s32 1, %s7
  %s10 = scalar_select 0, %s9, %s7
  $region1: #{tpu_custom_call.1} parent=0
    #allocation2 [shape = 'u8[12288]{0}', space=vmem, size = 0x3000, scoped, tag = 'output window, operand 0']
    #allocation3 [shape = 's32[2]{0}', space=sflag, size = 0x8, scoped, tag = 'scoped memory for tpu_custom_call.1']
    %11 = vsyncpa [#allocation3], 0
    %s12 = scalar_lea.sflag [#allocation3], 1
    %13 = vsyncpa %s12, 0
    loop: start=0, step=1, limit=4
    $region2: #{tpu_custom_call.1} parent=1 // loop_pre_header
      _
    $region3: #{tpu_custom_call.1} parent=1 // loop_header
      %s15 = sphi 0, %s19
      %p16 = scmp.ge.s32.totalorder %s15, 4
      %s25 = sphi 0, %s27
      %s28 = sphi 0, %s25
      %s29 = sphi 0, %s28
      %s45 = sphi 0, %s29
      %s51 = sphi 0, %s53
      %s54 = sphi 0, %s51
      %s55 = sphi 0, %s54
      %s71 = sphi 0, %s55
      %s77 = sphi 0, %s79
      %s80 = sphi 0, %s77
      %s81 = sphi 0, %s80
      %s97 = sphi 0, %s81
      %s103 = sphi 0, %s105
      %s106 = sphi 0, %s103
      %s107 = sphi 0, %s106
      %s123 = sphi 0, %s107
      %s129 = sphi 0, %s131
      %s132 = sphi 0, %s129
      %s133 = sphi 0, %s132
      %s149 = sphi 0, %s133
      %s155 = sphi 0, %s157
      %s158 = sphi 0, %s155
      %s159 = sphi 0, %s158
      %s175 = sphi 0, %s159
      %s181 = sphi 0, %s183
      %s184 = sphi 0, %s181
      %s185 = sphi 0, %s184
      %s201 = sphi 0, %s185
    $region4: #{tpu_custom_call.1} parent=1 // loop_header_branch
      %18 = sbr.rel (%p16) target = $region8
    $region5: #{tpu_custom_call.1} parent=1 // loop_body
      %s20 = ssub.s32 %s15, 1
      %s21 = ssub.s32 %s15, 2
      %s22 = sadd.s32 %s15, 1
      %s23 = ssub.s32 %s15, %s22
      %p24 = scmp.eq.s32.totalorder %s23, 0
      %s26 = sadd.s32 %s25, 1
      %s27 = scalar_select %p24, %s25, %s26
      %p30 = pneg %p24
      %p31 = scmp.eq.s32.totalorder %s15, 1
      %p32 = por %p30, %p31
      %p33 = scmp.ne.s32.totalorder %s25, %s28
      %p34 = scmp.eq.s32.totalorder %s15, 0
      %p35 = por %p33, %p34
      %p36 = scmp.ne.s32.totalorder %s25, %s28
      %p37 = scmp.eq.s32.totalorder %s20, 1
      %p38 = por %p36, %p37
      %p39 = scmp.ne.s32.totalorder %s28, %s29
      %p40 = scmp.eq.s32.totalorder %s20, 0
      %p41 = por %p39, %p40
      %p42 = scmp.ne.s32.totalorder %s28, %s29
      %p43 = scmp.eq.s32.totalorder %s21, 1
      %p44 = por %p42, %p43
      %p46 = scmp.ne.s32.totalorder %s29, %s45
      %p47 = scmp.eq.s32.totalorder %s21, 0
      %p48 = por %p46, %p47
      %s49 = ssub.s32 %s15, %s22
      %p50 = scmp.eq.s32.totalorder %s49, 0
      %s52 = sadd.s32 %s51, 1
      %s53 = scalar_select %p50, %s51, %s52
      %p56 = pneg %p50
      %p57 = scmp.eq.s32.totalorder %s15, 1
      %p58 = por %p56, %p57
      %p59 = scmp.ne.s32.totalorder %s51, %s54
      %p60 = scmp.eq.s32.totalorder %s15, 0
      %p61 = por %p59, %p60
      %p62 = scmp.ne.s32.totalorder %s51, %s54
      %p63 = scmp.eq.s32.totalorder %s20, 1
      %p64 = por %p62, %p63
      %p65 = scmp.ne.s32.totalorder %s54, %s55
      %p66 = scmp.eq.s32.totalorder %s20, 0
      %p67 = por %p65, %p66
      %p68 = scmp.ne.s32.totalorder %s54, %s55
      %p69 = scmp.eq.s32.totalorder %s21, 1
      %p70 = por %p68, %p69
      %p72 = scmp.ne.s32.totalorder %s55, %s71
      %p73 = scmp.eq.s32.totalorder %s21, 0
      %p74 = por %p72, %p73
      %s75 = ssub.s32 %s15, %s22
      %p76 = scmp.eq.s32.totalorder %s75, 0
      %s78 = sadd.s32 %s77, 1
      %s79 = scalar_select %p76, %s77, %s78
      %p82 = pneg %p76
      %p83 = scmp.eq.s32.totalorder %s15, 1
      %p84 = por %p82, %p83
      %p85 = scmp.ne.s32.totalorder %s77, %s80
      %p86 = scmp.eq.s32.totalorder %s15, 0
      %p87 = por %p85, %p86
      %p88 = scmp.ne.s32.totalorder %s77, %s80
      %p89 = scmp.eq.s32.totalorder %s20, 1
      %p90 = por %p88, %p89
      %p91 = scmp.ne.s32.totalorder %s80, %s81
      %p92 = scmp.eq.s32.totalorder %s20, 0
      %p93 = por %p91, %p92
      %p94 = scmp.ne.s32.totalorder %s80, %s81
      %p95 = scmp.eq.s32.totalorder %s21, 1
      %p96 = por %p94, %p95
      %p98 = scmp.ne.s32.totalorder %s81, %s97
      %p99 = scmp.eq.s32.totalorder %s21, 0
      %p100 = por %p98, %p99
      %s101 = ssub.s32 %s15, %s22
      %p102 = scmp.eq.s32.totalorder %s101, 0
      %s104 = sadd.s32 %s103, 1
      %s105 = scalar_select %p102, %s103, %s104
      %p108 = pneg %p102
      %p109 = scmp.eq.s32.totalorder %s15, 1
      %p110 = por %p108, %p109
      %p111 = scmp.ne.s32.totalorder %s103, %s106
      %p112 = scmp.eq.s32.totalorder %s15, 0
      %p113 = por %p111, %p112
      %p114 = scmp.ne.s32.totalorder %s103, %s106
      %p115 = scmp.eq.s32.totalorder %s20, 1
      %p116 = por %p114, %p115
      %p117 = scmp.ne.s32.totalorder %s106, %s107
      %p118 = scmp.eq.s32.totalorder %s20, 0
      %p119 = por %p117, %p118
      %p120 = scmp.ne.s32.totalorder %s106, %s107
      %p121 = scmp.eq.s32.totalorder %s21, 1
      %p122 = por %p120, %p121
      %p124 = scmp.ne.s32.totalorder %s107, %s123
      %p125 = scmp.eq.s32.totalorder %s21, 0
      %p126 = por %p124, %p125
      %s127 = ssub.s32 %s15, %s22
      %p128 = scmp.eq.s32.totalorder %s127, 0
      %s130 = sadd.s32 %s129, 1
      %s131 = scalar_select %p128, %s129, %s130
      %p134 = pneg %p128
      %p135 = scmp.eq.s32.totalorder %s15, 1
      %p136 = por %p134, %p135
      %p137 = scmp.ne.s32.totalorder %s129, %s132
      %p138 = scmp.eq.s32.totalorder %s15, 0
      %p139 = por %p137, %p138
      %p140 = scmp.ne.s32.totalorder %s129, %s132
      %p141 = scmp.eq.s32.totalorder %s20, 1
      %p142 = por %p140, %p141
      %p143 = scmp.ne.s32.totalorder %s132, %s133
      %p144 = scmp.eq.s32.totalorder %s20, 0
      %p145 = por %p143, %p144
      %p146 = scmp.ne.s32.totalorder %s132, %s133
      %p147 = scmp.eq.s32.totalorder %s21, 1
      %p148 = por %p146, %p147
      %p150 = scmp.ne.s32.totalorder %s133, %s149
      %p151 = scmp.eq.s32.totalorder %s21, 0
      %p152 = por %p150, %p151
      %s153 = ssub.s32 %s15, %s22
      %p154 = scmp.eq.s32.totalorder %s153, 0
      %s156 = sadd.s32 %s155, 1
      %s157 = scalar_select %p154, %s155, %s156
      %p160 = pneg %p154
      %p161 = scmp.eq.s32.totalorder %s15, 1
      %p162 = por %p160, %p161
      %p163 = scmp.ne.s32.totalorder %s155, %s158
      %p164 = scmp.eq.s32.totalorder %s15, 0
      %p165 = por %p163, %p164
      %p166 = scmp.ne.s32.totalorder %s155, %s158
      %p167 = scmp.eq.s32.totalorder %s20, 1
      %p168 = por %p166, %p167
      %p169 = scmp.ne.s32.totalorder %s158, %s159
      %p170 = scmp.eq.s32.totalorder %s20, 0
      %p171 = por %p169, %p170
      %p172 = scmp.ne.s32.totalorder %s158, %s159
      %p173 = scmp.eq.s32.totalorder %s21, 1
      %p174 = por %p172, %p173
      %p176 = scmp.ne.s32.totalorder %s159, %s175
      %p177 = scmp.eq.s32.totalorder %s21, 0
      %p178 = por %p176, %p177
      %s179 = ssub.s32 %s15, %s22
      %p180 = scmp.eq.s32.totalorder %s179, 0
      %s182 = sadd.s32 %s181, 1
      %s183 = scalar_select %p180, %s181, %s182
      %p186 = pneg %p180
      %p187 = scmp.eq.s32.totalorder %s15, 1
      %p188 = por %p186, %p187
      %p189 = scmp.ne.s32.totalorder %s181, %s184
      %p190 = scmp.eq.s32.totalorder %s15, 0
      %p191 = por %p189, %p190
      %p192 = scmp.ne.s32.totalorder %s181, %s184
      %p193 = scmp.eq.s32.totalorder %s20, 1
      %p194 = por %p192, %p193
      %p195 = scmp.ne.s32.totalorder %s184, %s185
      %p196 = scmp.eq.s32.totalorder %s20, 0
      %p197 = por %p195, %p196
      %p198 = scmp.ne.s32.totalorder %s184, %s185
      %p199 = scmp.eq.s32.totalorder %s21, 1
      %p200 = por %p198, %p199
      %p202 = scmp.ne.s32.totalorder %s185, %s201
      %p203 = scmp.eq.s32.totalorder %s21, 0
      %p204 = por %p202, %p203
      %p205 = scmp.le.s32.totalorder 1, %s15
      %p206 = scmp.lt.s32.totalorder %s15, 3
      %p207 = pnand %p205, %p206
      %p208 = pneg %p207
      // Predicated region
      $region9: #{tpu_custom_call.1} parent=5 // pred_check
        _
      $region10: #{tpu_custom_call.1} parent=5 // pred_check_branch
        %210 = sbr.rel (%p207) target = $region12
      $region11: #{tpu_custom_call.1} parent=5 // pred_region
        %s211 = ssub.s32 %s15, 1
      $region12: #{tpu_custom_call.1} parent=5 // pred_fallthru
        _
      %p212 = scmp.lt.s32.totalorder %s15, 2
      // Predicated region
      $region13: #{tpu_custom_call.1} parent=5 // pred_check
        %p213 = pneg %p212
      $region14: #{tpu_custom_call.1} parent=5 // pred_check_branch
        %215 = sbr.rel (%p213) target = $region16
      $region15: #{tpu_custom_call.1} parent=5 // pred_region
        // Predicated region
        $region17: #{tpu_custom_call.1} parent=15 // pred_check
          %p216 = pneg %p35
        $region18: #{tpu_custom_call.1} parent=15 // pred_check_branch
          %218 = sbr.rel (%p216) target = $region20
        $region19: #{tpu_custom_call.1} parent=15 // pred_region
          %s219 = smul.u32 6, %s15
          %p220 = scmp.lt.s32.totalorder %s219, 11
          %s221 = scalar_select %p220, %s219, 11
          %s222 = smul.addr %s221, 16
          %s223 = smul.addr %s222, 4
          %s224 = scalar_lea.vmem %s0, %s223
          %s225 = smul.u32 6, %s15
        $region20: #{tpu_custom_call.1} parent=15 // pred_fallthru
          _
        // Predicated region
        $region21: #{tpu_custom_call.1} parent=15 // pred_check
          %p226 = pneg %p61
        $region22: #{tpu_custom_call.1} parent=15 // pred_check_branch
          %228 = sbr.rel (%p226) target = $region24
        $region23: #{tpu_custom_call.1} parent=15 // pred_region
          %s229 = smul.u32 6, %s15
          %p230 = scmp.lt.s32.totalorder %s229, 11
          %s231 = scalar_select %p230, %s229, 11
          %s232 = smul.addr %s231, 2
          %s233 = scalar_lea.vmem %s1, %s232
          %s234 = smul.u32 6, %s15
        $region24: #{tpu_custom_call.1} parent=15 // pred_fallthru
          _
        // Predicated region
        $region25: #{tpu_custom_call.1} parent=15 // pred_check
          %p235 = pneg %p87
        $region26: #{tpu_custom_call.1} parent=15 // pred_check_branch
          %237 = sbr.rel (%p235) target = $region28
        $region27: #{tpu_custom_call.1} parent=15 // pred_region
          %s238 = smul.u32 6, %s15
          %p239 = scmp.lt.s32.totalorder %s238, 11
          %s240 = scalar_select %p239, %s238, 11
          %s241 = smul.addr %s240, 8
          %s242 = smul.addr %s241, 4
          %s243 = scalar_lea.vmem %s2, %s242
          %s244 = smul.u32 6, %s15
        $region28: #{tpu_custom_call.1} parent=15 // pred_fallthru
          _
        // Predicated region
        $region29: #{tpu_custom_call.1} parent=15 // pred_check
          %p245 = pneg %p113
        $region30: #{tpu_custom_call.1} parent=15 // pred_check_branch
          %247 = sbr.rel (%p245) target = $region32
        $region31: #{tpu_custom_call.1} parent=15 // pred_region
          %s248 = smul.u32 6, %s15
          %p249 = scmp.lt.s32.totalorder %s248, 11
          %s250 = scalar_select %p249, %s248, 11
          %s251 = smul.addr %s250, 2
          %s252 = scalar_lea.vmem %s3, %s251
          %s253 = smul.u32 6, %s15
        $region32: #{tpu_custom_call.1} parent=15 // pred_fallthru
          _
        // Predicated region
        $region33: #{tpu_custom_call.1} parent=15 // pred_check
          %p254 = pneg %p139
        $region34: #{tpu_custom_call.1} parent=15 // pred_check_branch
          %256 = sbr.rel (%p254) target = $region36
        $region35: #{tpu_custom_call.1} parent=15 // pred_region
          %s257 = smul.u32 6, %s15
          %p258 = scmp.lt.s32.totalorder %s257, 11
          %s259 = scalar_select %p258, %s257, 11
          %s260 = smul.addr %s259, 32
          %s261 = smul.addr %s260, 4
          %s262 = scalar_lea.vmem %s4, %s261
          %s263 = smul.u32 6, %s15
        $region36: #{tpu_custom_call.1} parent=15 // pred_fallthru
          _
        // Predicated region
        $region37: #{tpu_custom_call.1} parent=15 // pred_check
          %p264 = pneg %p165
        $region38: #{tpu_custom_call.1} parent=15 // pred_check_branch
          %266 = sbr.rel (%p264) target = $region40
        $region39: #{tpu_custom_call.1} parent=15 // pred_region
          %s267 = smul.u32 6, %s15
          %p268 = scmp.lt.s32.totalorder %s267, 11
          %s269 = scalar_select %p268, %s267, 11
          %s270 = scalar_lea.vmem %s5, %s269
          %s271 = smul.u32 6, %s15
        $region40: #{tpu_custom_call.1} parent=15 // pred_fallthru
          _
      $region16: #{tpu_custom_call.1} parent=5 // pred_fallthru
        _
      %p272 = scmp.le.s32.totalorder 1, %s15
      %p273 = scmp.lt.s32.totalorder %s15, 3
      %p274 = pnand %p272, %p273
      %p275 = pneg %p274
      // Predicated region
      $region41: #{tpu_custom_call.1} parent=5 // pred_check
        _
      $region42: #{tpu_custom_call.1} parent=5 // pred_check_branch
        %277 = sbr.rel (%p274) target = $region44
      $region43: #{tpu_custom_call.1} parent=5 // pred_region
        %s278 = ssub.s32 %s15, 1
        %s279 = smul.u32 6, %s20
        %p280 = scmp.lt.s32.totalorder %s279, 11
        %s281 = scalar_select %p280, %s279, 11
        %s282 = smul.addr %s281, 16
        %s283 = smul.addr %s282, 4
        %s284 = scalar_lea.vmem %s0, %s283
        %p285 = pneg %p41
        %p286 = pneg %p38
        %s287 = smul.u32 6, %s20
        %p288 = scmp.lt.s32.totalorder %s287, 11
        %s289 = scalar_select %p288, %s287, 11
        %s290 = smul.addr %s289, 2
        %s291 = scalar_lea.vmem %s1, %s290
        %p292 = pneg %p67
        %p293 = pneg %p64
        %s294 = smul.u32 6, %s20
        %p295 = scmp.lt.s32.totalorder %s294, 11
        %s296 = scalar_select %p295, %s294, 11
        %s297 = smul.addr %s296, 8
        %s298 = smul.addr %s297, 4
        %s299 = scalar_lea.vmem %s2, %s298
        %p300 = pneg %p93
        %p301 = pneg %p90
        %s302 = smul.u32 6, %s20
        %p303 = scmp.lt.s32.totalorder %s302, 11
        %s304 = scalar_select %p303, %s302, 11
        %s305 = smul.addr %s304, 2
        %s306 = scalar_lea.vmem %s3, %s305
        %p307 = pneg %p119
        %p308 = pneg %p116
        %s309 = smul.u32 6, %s20
        %p310 = scmp.lt.s32.totalorder %s309, 11
        %s311 = scalar_select %p310, %s309, 11
        %s312 = smul.addr %s311, 32
        %s313 = smul.addr %s312, 4
        %s314 = scalar_lea.vmem %s4, %s313
        %p315 = pneg %p145
        %p316 = pneg %p142
        %s317 = smul.u32 6, %s20
        %p318 = scmp.lt.s32.totalorder %s317, 11
        %s319 = scalar_select %p318, %s317, 11
        %s320 = scalar_lea.vmem %s5, %s319
        %p321 = pneg %p171
        %p322 = pneg %p168
        %p323 = pneg %p197
        %p324 = pneg %p194
        %s325 = sand.u32 %s184, 1
        %s326 = scalar_lea.sflag [#allocation3], %s325
        %s327 = sand.u32 %s184, 1
        %s328 = smul.addr %s327, 12
        %s329 = scalar_lea.vmem [#allocation2], %s328
        %s330 = smul.u32 6, %s20
        %p331 = scmp.lt.s32.totalorder %s330, 11
        %s332 = scalar_select %p331, %s330, 11
        %s333 = smul.addr %s332, 16
        %s334 = smul.addr %s333, 4
        %s335 = scalar_lea.vmem %s0, %s334
        %s336 = smul.u32 6, %s20
        %s337 = smul.u32 6, %s20
        %p338 = scmp.lt.s32.totalorder %s337, 11
        %s339 = scalar_select %p338, %s337, 11
        %s340 = smul.addr %s339, 2
        %s341 = scalar_lea.vmem %s1, %s340
        %s342 = smul.u32 6, %s20
        %s343 = smul.u32 6, %s20
        %p344 = scmp.lt.s32.totalorder %s343, 11
        %s345 = scalar_select %p344, %s343, 11
        %s346 = smul.addr %s345, 8
        %s347 = smul.addr %s346, 4
        %s348 = scalar_lea.vmem %s2, %s347
        %s349 = smul.u32 6, %s20
        %s350 = smul.u32 6, %s20
        %p351 = scmp.lt.s32.totalorder %s350, 11
        %s352 = scalar_select %p351, %s350, 11
        %s353 = smul.addr %s352, 2
        %s354 = scalar_lea.vmem %s3, %s353
        %s355 = smul.u32 6, %s20
        %s356 = smul.u32 6, %s20
        %p357 = scmp.lt.s32.totalorder %s356, 11
        %s358 = scalar_select %p357, %s356, 11
        %s359 = smul.addr %s358, 32
        %s360 = smul.addr %s359, 4
        %s361 = scalar_lea.vmem %s4, %s360
        %s362 = smul.u32 6, %s20
        %s363 = smul.u32 6, %s20
        %p364 = scmp.lt.s32.totalorder %s363, 11
        %s365 = scalar_select %p364, %s363, 11
        %s366 = scalar_lea.vmem %s5, %s365
        %s367 = smul.u32 6, %s20
        %s368 = smul.u32 6, %s20
        %v370 = vld [vmem:[%s335] sm:$0xf]
        %v371 = vld [vmem:[%s335 + $0x4] sm:$0xf]
        %v372 = vld [vmem:[%s335 + $0x8] sm:$0xf]
        %v373 = vld [vmem:[%s335 + $0xc] sm:$0xf]
        %v374 = vld [vmem:[%s335 + $0x10] sm:$0xf]
        %v375 = vld [vmem:[%s335 + $0x14] sm:$0xf]
        %v376 = vld [vmem:[%s335 + $0x18] sm:$0xf]
        %v377 = vld [vmem:[%s335 + $0x1c] sm:$0xf]
        %v378 = vld [vmem:[%s335 + $0x20] sm:$0xf]
        %v379 = vld [vmem:[%s335 + $0x24] sm:$0xf]
        %v380 = vld [vmem:[%s335 + $0x28] sm:$0xf]
        %v381 = vld [vmem:[%s335 + $0x2c] sm:$0xf]
        %v382 = vld [vmem:[%s335 + $0x30] sm:$0xf]
        %v383 = vld [vmem:[%s335 + $0x34] sm:$0xf]
        %v384 = vld [vmem:[%s335 + $0x38] sm:$0xf]
        %v385 = vld [vmem:[%s335 + $0x3c] sm:$0xf]
        %v386 = vld [vmem:[%s335 + $0x40] sm:$0xf]
        %v387 = vld [vmem:[%s335 + $0x44] sm:$0xf]
        %v388 = vld [vmem:[%s335 + $0x48] sm:$0xf]
        %v389 = vld [vmem:[%s335 + $0x4c] sm:$0xf]
        %v390 = vld [vmem:[%s335 + $0x50] sm:$0xf]
        %v391 = vld [vmem:[%s335 + $0x54] sm:$0xf]
        %v392 = vld [vmem:[%s335 + $0x58] sm:$0xf]
        %v393 = vld [vmem:[%s335 + $0x5c] sm:$0xf]
        %v394 = vld [vmem:[%s335 + $0x60] sm:$0xf]
        %v395 = vld [vmem:[%s335 + $0x64] sm:$0xf]
        %v396 = vld [vmem:[%s335 + $0x68] sm:$0xf]
        %v397 = vld [vmem:[%s335 + $0x6c] sm:$0xf]
        %v398 = vld [vmem:[%s335 + $0x70] sm:$0xf]
        %v399 = vld [vmem:[%s335 + $0x74] sm:$0xf]
        %v400 = vld [vmem:[%s335 + $0x78] sm:$0xf]
        %v401 = vld [vmem:[%s335 + $0x7c] sm:$0xf]
        %v402 = vld [vmem:[%s335 + $0x80] sm:$0xf]
        %v403 = vld [vmem:[%s335 + $0x84] sm:$0xf]
        %v404 = vld [vmem:[%s335 + $0x88] sm:$0xf]
        %v405 = vld [vmem:[%s335 + $0x8c] sm:$0xf]
        %v406 = vld [vmem:[%s335 + $0x90] sm:$0xf]
        %v407 = vld [vmem:[%s335 + $0x94] sm:$0xf]
        %v408 = vld [vmem:[%s335 + $0x98] sm:$0xf]
        %v409 = vld [vmem:[%s335 + $0x9c] sm:$0xf]
        %v410 = vld [vmem:[%s335 + $0xa0] sm:$0xf]
        %v411 = vld [vmem:[%s335 + $0xa4] sm:$0xf]
        %v412 = vld [vmem:[%s335 + $0xa8] sm:$0xf]
        %v413 = vld [vmem:[%s335 + $0xac] sm:$0xf]
        %v414 = vld [vmem:[%s335 + $0xb0] sm:$0xf]
        %v415 = vld [vmem:[%s335 + $0xb4] sm:$0xf]
        %v416 = vld [vmem:[%s335 + $0xb8] sm:$0xf]
        %v417 = vld [vmem:[%s335 + $0xbc] sm:$0xf]
        %v418 = vld [vmem:[%s335 + $0xc0] sm:$0xf]
        %v419 = vld [vmem:[%s335 + $0xc4] sm:$0xf]
        %v420 = vld [vmem:[%s335 + $0xc8] sm:$0xf]
        %v421 = vld [vmem:[%s335 + $0xcc] sm:$0xf]
        %v422 = vld [vmem:[%s335 + $0xd0] sm:$0xf]
        %v423 = vld [vmem:[%s335 + $0xd4] sm:$0xf]
        %v424 = vld [vmem:[%s335 + $0xd8] sm:$0xf]
        %v425 = vld [vmem:[%s335 + $0xdc] sm:$0xf]
        %v426 = vld [vmem:[%s335 + $0xe0] sm:$0xf]
        %v427 = vld [vmem:[%s335 + $0xe4] sm:$0xf]
        %v428 = vld [vmem:[%s335 + $0xe8] sm:$0xf]
        %v429 = vld [vmem:[%s335 + $0xec] sm:$0xf]
        %v430 = vld [vmem:[%s335 + $0xf0] sm:$0xf]
        %v431 = vld [vmem:[%s335 + $0xf4] sm:$0xf]
        %v432 = vld [vmem:[%s335 + $0xf8] sm:$0xf]
        %v433 = vld [vmem:[%s335 + $0xfc] sm:$0xf]
        %v434 = vld [vmem:[%s335 + $0x100] sm:$0xf]
        %v435 = vld [vmem:[%s335 + $0x104] sm:$0xf]
        %v436 = vld [vmem:[%s335 + $0x108] sm:$0xf]
        %v437 = vld [vmem:[%s335 + $0x10c] sm:$0xf]
        %v438 = vld [vmem:[%s335 + $0x110] sm:$0xf]
        %v439 = vld [vmem:[%s335 + $0x114] sm:$0xf]
        %v440 = vld [vmem:[%s335 + $0x118] sm:$0xf]
        %v441 = vld [vmem:[%s335 + $0x11c] sm:$0xf]
        %v442 = vld [vmem:[%s335 + $0x120] sm:$0xf]
        %v443 = vld [vmem:[%s335 + $0x124] sm:$0xf]
        %v444 = vld [vmem:[%s335 + $0x128] sm:$0xf]
        %v445 = vld [vmem:[%s335 + $0x12c] sm:$0xf]
        %v446 = vld [vmem:[%s335 + $0x130] sm:$0xf]
        %v447 = vld [vmem:[%s335 + $0x134] sm:$0xf]
        %v448 = vld [vmem:[%s335 + $0x138] sm:$0xf]
        %v449 = vld [vmem:[%s335 + $0x13c] sm:$0xf]
        %v450 = vld [vmem:[%s335 + $0x140] sm:$0xf]
        %v451 = vld [vmem:[%s335 + $0x144] sm:$0xf]
        %v452 = vld [vmem:[%s335 + $0x148] sm:$0xf]
        %v453 = vld [vmem:[%s335 + $0x14c] sm:$0xf]
        %v454 = vld [vmem:[%s335 + $0x150] sm:$0xf]
        %v455 = vld [vmem:[%s335 + $0x154] sm:$0xf]
        %v456 = vld [vmem:[%s335 + $0x158] sm:$0xf]
        %v457 = vld [vmem:[%s335 + $0x15c] sm:$0xf]
        %v458 = vld [vmem:[%s335 + $0x160] sm:$0xf]
        %v459 = vld [vmem:[%s335 + $0x164] sm:$0xf]
        %v460 = vld [vmem:[%s335 + $0x168] sm:$0xf]
        %v461 = vld [vmem:[%s335 + $0x16c] sm:$0xf]
        %v462 = vld [vmem:[%s335 + $0x170] sm:$0xf]
        %v463 = vld [vmem:[%s335 + $0x174] sm:$0xf]
        %v464 = vld [vmem:[%s335 + $0x178] sm:$0xf]
        %v465 = vld [vmem:[%s335 + $0x17c] sm:$0xf]
        %v466 = vld [vmem:[%s341] sm:$0x3]
        %v467 = vld [vmem:[%s341 + $0x2] sm:$0x3]
        %v468 = vld [vmem:[%s341 + $0x4] sm:$0x3]
        %v469 = vld [vmem:[%s341 + $0x6] sm:$0x3]
        %v470 = vld [vmem:[%s341 + $0x8] sm:$0x3]
        %v471 = vld [vmem:[%s341 + $0xa] sm:$0x3]
        %v488 = vunpack.c.l.b16 %v370
        %v489 = vunpack.c.l.b16 %v371
        %v490 = vunpack.c.l.b16 %v372
        %v491 = vunpack.c.l.b16 %v373
        %v492 = vunpack.c.l.b16 %v374
        %v493 = vunpack.c.l.b16 %v375
        %v494 = vunpack.c.l.b16 %v376
        %v495 = vunpack.c.l.b16 %v377
        %v496 = vunpack.c.l.b16 %v378
        %v497 = vunpack.c.l.b16 %v379
        %v498 = vunpack.c.l.b16 %v380
        %v499 = vunpack.c.l.b16 %v381
        %v500 = vunpack.c.l.b16 %v382
        %v501 = vunpack.c.l.b16 %v383
        %v502 = vunpack.c.l.b16 %v384
        %v503 = vunpack.c.l.b16 %v385
        %v504 = vpack.c.b16 %v489, %v488
        %v505 = vpack.c.b16 %v491, %v490
        %v506 = vpack.c.b16 %v493, %v492
        %v507 = vpack.c.b16 %v495, %v494
        %v508 = vpack.c.b16 %v497, %v496
        %v509 = vpack.c.b16 %v499, %v498
        %v510 = vpack.c.b16 %v501, %v500
        %v511 = vpack.c.b16 %v503, %v502
        %vm512 = vcmask 31744
        %v514 = vsel %vm512, %v504, 0
        %v517 = vsel %vm512, %v505, 0
        %v520 = vsel %vm512, %v506, 0
        %v523 = vsel %vm512, %v507, 0
        %v526 = vsel %vm512, %v508, 0
        %v529 = vsel %vm512, %v509, 0
        %v532 = vsel %vm512, %v510, 0
        %v535 = vsel %vm512, %v511, 0
        %vm537 = vcmask 1041408
        %v539 = vsel %vm537, %v466, 0
        %541 = vmatpush.bf16.msra.mxu0 0
        %542 = vmatpush.bf16.msra.mxu0 0
        %543 = vmatpush.bf16.msra.mxu0 0
        %544 = vmatpush.bf16.msra.mxu0 0
        %545 = vmatpush.bf16.msra.mxu0 0
        %546 = vmatpush.bf16.msra.mxu0 0
        %547 = vmatpush.bf16.msra.mxu0 0
        %548 = vmatpush.bf16.msra.mxu0 %v539
        %549 = vmatmul.bf16.gmra.mxu0 %v514
        %v550 = vpop.f32.mrf.mxu0
        %v551 = vadd.f32 0.0, %v550
        %v552 = vpop.f32.mrf.mxu0
        %v553 = vadd.f32 0.0, %v552
        %554 = vmatmul.bf16.gmra.mxu0 %v517
        %v555 = vpop.f32.mrf.mxu0
        %v556 = vadd.f32 0.0, %v555
        %v557 = vpop.f32.mrf.mxu0
        %v558 = vadd.f32 0.0, %v557
        %559 = vmatmul.bf16.gmra.mxu0 %v520
        %v560 = vpop.f32.mrf.mxu0
        %v561 = vadd.f32 0.0, %v560
        %v562 = vpop.f32.mrf.mxu0
        %v563 = vadd.f32 0.0, %v562
        %564 = vmatmul.bf16.gmra.mxu0 %v523
        %v565 = vpop.f32.mrf.mxu0
        %v566 = vadd.f32 0.0, %v565
        %v567 = vpop.f32.mrf.mxu0
        %v568 = vadd.f32 0.0, %v567
        %569 = vmatmul.bf16.gmra.mxu0 %v526
        %v570 = vpop.f32.mrf.mxu0
        %v571 = vadd.f32 0.0, %v570
        %v572 = vpop.f32.mrf.mxu0
        %v573 = vadd.f32 0.0, %v572
        %574 = vmatmul.bf16.gmra.mxu0 %v529
        %v575 = vpop.f32.mrf.mxu0
        %v576 = vadd.f32 0.0, %v575
        %v577 = vpop.f32.mrf.mxu0
        %v578 = vadd.f32 0.0, %v577
        %579 = vmatmul.bf16.gmra.mxu0 %v532
        %v580 = vpop.f32.mrf.mxu0
        %v581 = vadd.f32 0.0, %v580
        %v582 = vpop.f32.mrf.mxu0
        %v583 = vadd.f32 0.0, %v582
        %584 = vmatmul.bf16.gmra.mxu0 %v535
        %v585 = vpop.f32.mrf.mxu0
        %v586 = vadd.f32 0.0, %v585
        %v587 = vpop.f32.mrf.mxu0
        %v588 = vadd.f32 0.0, %v587
        %589 = vdwg.mxu0
        %v606 = vunpack.c.l.b16 %v386
        %v607 = vunpack.c.l.b16 %v387
        %v608 = vunpack.c.l.b16 %v388
        %v609 = vunpack.c.l.b16 %v389
        %v610 = vunpack.c.l.b16 %v390
        %v611 = vunpack.c.l.b16 %v391
        %v612 = vunpack.c.l.b16 %v392
        %v613 = vunpack.c.l.b16 %v393
        %v614 = vunpack.c.l.b16 %v394
        %v615 = vunpack.c.l.b16 %v395
        %v616 = vunpack.c.l.b16 %v396
        %v617 = vunpack.c.l.b16 %v397
        %v618 = vunpack.c.l.b16 %v398
        %v619 = vunpack.c.l.b16 %v399
        %v620 = vunpack.c.l.b16 %v400
        %v621 = vunpack.c.l.b16 %v401
        %v622 = vpack.c.b16 %v607, %v606
        %v623 = vpack.c.b16 %v609, %v608
        %v624 = vpack.c.b16 %v611, %v610
        %v625 = vpack.c.b16 %v613, %v612
        %v626 = vpack.c.b16 %v615, %v614
        %v627 = vpack.c.b16 %v617, %v616
        %v628 = vpack.c.b16 %v619, %v618
        %v629 = vpack.c.b16 %v621, %v620
        %v631 = vsel %vm512, %v622, 0
        %v634 = vsel %vm512, %v623, 0
        %v637 = vsel %vm512, %v624, 0
        %v640 = vsel %vm512, %v625, 0
        %v643 = vsel %vm512, %v626, 0
        %v646 = vsel %vm512, %v627, 0
        %v649 = vsel %vm512, %v628, 0
        %v652 = vsel %vm512, %v629, 0
        %v655 = vsel %vm537, %v467, 0
        %657 = vmatpush.bf16.msra.mxu0 0
        %658 = vmatpush.bf16.msra.mxu0 0
        %659 = vmatpush.bf16.msra.mxu0 0
        %660 = vmatpush.bf16.msra.mxu0 0
        %661 = vmatpush.bf16.msra.mxu0 0
        %662 = vmatpush.bf16.msra.mxu0 0
        %663 = vmatpush.bf16.msra.mxu0 0
        %664 = vmatpush.bf16.msra.mxu0 %v655
        %665 = vmatmul.bf16.gmra.mxu0 %v631
        %v666 = vpop.f32.mrf.mxu0
        %v667 = vadd.f32 0.0, %v666
        %v668 = vpop.f32.mrf.mxu0
        %v669 = vadd.f32 0.0, %v668
        %670 = vmatmul.bf16.gmra.mxu0 %v634
        %v671 = vpop.f32.mrf.mxu0
        %v672 = vadd.f32 0.0, %v671
        %v673 = vpop.f32.mrf.mxu0
        %v674 = vadd.f32 0.0, %v673
        %675 = vmatmul.bf16.gmra.mxu0 %v637
        %v676 = vpop.f32.mrf.mxu0
        %v677 = vadd.f32 0.0, %v676
        %v678 = vpop.f32.mrf.mxu0
        %v679 = vadd.f32 0.0, %v678
        %680 = vmatmul.bf16.gmra.mxu0 %v640
        %v681 = vpop.f32.mrf.mxu0
        %v682 = vadd.f32 0.0, %v681
        %v683 = vpop.f32.mrf.mxu0
        %v684 = vadd.f32 0.0, %v683
        %685 = vmatmul.bf16.gmra.mxu0 %v643
        %v686 = vpop.f32.mrf.mxu0
        %v687 = vadd.f32 0.0, %v686
        %v688 = vpop.f32.mrf.mxu0
        %v689 = vadd.f32 0.0, %v688
        %690 = vmatmul.bf16.gmra.mxu0 %v646
        %v691 = vpop.f32.mrf.mxu0
        %v692 = vadd.f32 0.0, %v691
        %v693 = vpop.f32.mrf.mxu0
        %v694 = vadd.f32 0.0, %v693
        %695 = vmatmul.bf16.gmra.mxu0 %v649
        %v696 = vpop.f32.mrf.mxu0
        %v697 = vadd.f32 0.0, %v696
        %v698 = vpop.f32.mrf.mxu0
        %v699 = vadd.f32 0.0, %v698
        %700 = vmatmul.bf16.gmra.mxu0 %v652
        %v701 = vpop.f32.mrf.mxu0
        %v702 = vadd.f32 0.0, %v701
        %v703 = vpop.f32.mrf.mxu0
        %v704 = vadd.f32 0.0, %v703
        %705 = vdwg.mxu0
        %v722 = vunpack.c.l.b16 %v402
        %v723 = vunpack.c.l.b16 %v403
        %v724 = vunpack.c.l.b16 %v404
        %v725 = vunpack.c.l.b16 %v405
        %v726 = vunpack.c.l.b16 %v406
        %v727 = vunpack.c.l.b16 %v407
        %v728 = vunpack.c.l.b16 %v408
        %v729 = vunpack.c.l.b16 %v409
        %v730 = vunpack.c.l.b16 %v410
        %v731 = vunpack.c.l.b16 %v411
        %v732 = vunpack.c.l.b16 %v412
        %v733 = vunpack.c.l.b16 %v413
        %v734 = vunpack.c.l.b16 %v414
        %v735 = vunpack.c.l.b16 %v415
        %v736 = vunpack.c.l.b16 %v416
        %v737 = vunpack.c.l.b16 %v417
        %v738 = vpack.c.b16 %v723, %v722
        %v739 = vpack.c.b16 %v725, %v724
        %v740 = vpack.c.b16 %v727, %v726
        %v741 = vpack.c.b16 %v729, %v728
        %v742 = vpack.c.b16 %v731, %v730
        %v743 = vpack.c.b16 %v733, %v732
        %v744 = vpack.c.b16 %v735, %v734
        %v745 = vpack.c.b16 %v737, %v736
        %v747 = vsel %vm512, %v738, 0
        %v750 = vsel %vm512, %v739, 0
        %v753 = vsel %vm512, %v740, 0
        %v756 = vsel %vm512, %v741, 0
        %v759 = vsel %vm512, %v742, 0
        %v762 = vsel %vm512, %v743, 0
        %v765 = vsel %vm512, %v744, 0
        %v768 = vsel %vm512, %v745, 0
        %v771 = vsel %vm537, %v468, 0
        %773 = vmatpush.bf16.msra.mxu0 0
        %774 = vmatpush.bf16.msra.mxu0 0
        %775 = vmatpush.bf16.msra.mxu0 0
        %776 = vmatpush.bf16.msra.mxu0 0
        %777 = vmatpush.bf16.msra.mxu0 0
        %778 = vmatpush.bf16.msra.mxu0 0
        %779 = vmatpush.bf16.msra.mxu0 0
        %780 = vmatpush.bf16.msra.mxu0 %v771
        %781 = vmatmul.bf16.gmra.mxu0 %v747
        %v782 = vpop.f32.mrf.mxu0
        %v783 = vadd.f32 0.0, %v782
        %v784 = vpop.f32.mrf.mxu0
        %v785 = vadd.f32 0.0, %v784
        %786 = vmatmul.bf16.gmra.mxu0 %v750
        %v787 = vpop.f32.mrf.mxu0
        %v788 = vadd.f32 0.0, %v787
        %v789 = vpop.f32.mrf.mxu0
        %v790 = vadd.f32 0.0, %v789
        %791 = vmatmul.bf16.gmra.mxu0 %v753
        %v792 = vpop.f32.mrf.mxu0
        %v793 = vadd.f32 0.0, %v792
        %v794 = vpop.f32.mrf.mxu0
        %v795 = vadd.f32 0.0, %v794
        %796 = vmatmul.bf16.gmra.mxu0 %v756
        %v797 = vpop.f32.mrf.mxu0
        %v798 = vadd.f32 0.0, %v797
        %v799 = vpop.f32.mrf.mxu0
        %v800 = vadd.f32 0.0, %v799
        %801 = vmatmul.bf16.gmra.mxu0 %v759
        %v802 = vpop.f32.mrf.mxu0
        %v803 = vadd.f32 0.0, %v802
        %v804 = vpop.f32.mrf.mxu0
        %v805 = vadd.f32 0.0, %v804
        %806 = vmatmul.bf16.gmra.mxu0 %v762
        %v807 = vpop.f32.mrf.mxu0
        %v808 = vadd.f32 0.0, %v807
        %v809 = vpop.f32.mrf.mxu0
        %v810 = vadd.f32 0.0, %v809
        %811 = vmatmul.bf16.gmra.mxu0 %v765
        %v812 = vpop.f32.mrf.mxu0
        %v813 = vadd.f32 0.0, %v812
        %v814 = vpop.f32.mrf.mxu0
        %v815 = vadd.f32 0.0, %v814
        %816 = vmatmul.bf16.gmra.mxu0 %v768
        %v817 = vpop.f32.mrf.mxu0
        %v818 = vadd.f32 0.0, %v817
        %v819 = vpop.f32.mrf.mxu0
        %v820 = vadd.f32 0.0, %v819
        %821 = vdwg.mxu0
        %v838 = vunpack.c.l.b16 %v418
        %v839 = vunpack.c.l.b16 %v419
        %v840 = vunpack.c.l.b16 %v420
        %v841 = vunpack.c.l.b16 %v421
        %v842 = vunpack.c.l.b16 %v422
        %v843 = vunpack.c.l.b16 %v423
        %v844 = vunpack.c.l.b16 %v424
        %v845 = vunpack.c.l.b16 %v425
        %v846 = vunpack.c.l.b16 %v426
        %v847 = vunpack.c.l.b16 %v427
        %v848 = vunpack.c.l.b16 %v428
        %v849 = vunpack.c.l.b16 %v429
        %v850 = vunpack.c.l.b16 %v430
        %v851 = vunpack.c.l.b16 %v431
        %v852 = vunpack.c.l.b16 %v432
        %v853 = vunpack.c.l.b16 %v433
        %v854 = vpack.c.b16 %v839, %v838
        %v855 = vpack.c.b16 %v841, %v840
        %v856 = vpack.c.b16 %v843, %v842
        %v857 = vpack.c.b16 %v845, %v844
        %v858 = vpack.c.b16 %v847, %v846
        %v859 = vpack.c.b16 %v849, %v848
        %v860 = vpack.c.b16 %v851, %v850
        %v861 = vpack.c.b16 %v853, %v852
        %v863 = vsel %vm512, %v854, 0
        %v866 = vsel %vm512, %v855, 0
        %v869 = vsel %vm512, %v856, 0
        %v872 = vsel %vm512, %v857, 0
        %v875 = vsel %vm512, %v858, 0
        %v878 = vsel %vm512, %v859, 0
        %v881 = vsel %vm512, %v860, 0
        %v884 = vsel %vm512, %v861, 0
        %v887 = vsel %vm537, %v469, 0
        %889 = vmatpush.bf16.msra.mxu0 0
        %890 = vmatpush.bf16.msra.mxu0 0
        %891 = vmatpush.bf16.msra.mxu0 0
        %892 = vmatpush.bf16.msra.mxu0 0
        %893 = vmatpush.bf16.msra.mxu0 0
        %894 = vmatpush.bf16.msra.mxu0 0
        %895 = vmatpush.bf16.msra.mxu0 0
        %896 = vmatpush.bf16.msra.mxu0 %v887
        %897 = vmatmul.bf16.gmra.mxu0 %v863
        %v898 = vpop.f32.mrf.mxu0
        %v899 = vadd.f32 0.0, %v898
        %v900 = vpop.f32.mrf.mxu0
        %v901 = vadd.f32 0.0, %v900
        %902 = vmatmul.bf16.gmra.mxu0 %v866
        %v903 = vpop.f32.mrf.mxu0
        %v904 = vadd.f32 0.0, %v903
        %v905 = vpop.f32.mrf.mxu0
        %v906 = vadd.f32 0.0, %v905
        %907 = vmatmul.bf16.gmra.mxu0 %v869
        %v908 = vpop.f32.mrf.mxu0
        %v909 = vadd.f32 0.0, %v908
        %v910 = vpop.f32.mrf.mxu0
        %v911 = vadd.f32 0.0, %v910
        %912 = vmatmul.bf16.gmra.mxu0 %v872
        %v913 = vpop.f32.mrf.mxu0
        %v914 = vadd.f32 0.0, %v913
        %v915 = vpop.f32.mrf.mxu0
        %v916 = vadd.f32 0.0, %v915
        %917 = vmatmul.bf16.gmra.mxu0 %v875
        %v918 = vpop.f32.mrf.mxu0
        %v919 = vadd.f32 0.0, %v918
        %v920 = vpop.f32.mrf.mxu0
        %v921 = vadd.f32 0.0, %v920
        %922 = vmatmul.bf16.gmra.mxu0 %v878
        %v923 = vpop.f32.mrf.mxu0
        %v924 = vadd.f32 0.0, %v923
        %v925 = vpop.f32.mrf.mxu0
        %v926 = vadd.f32 0.0, %v925
        %927 = vmatmul.bf16.gmra.mxu0 %v881
        %v928 = vpop.f32.mrf.mxu0
        %v929 = vadd.f32 0.0, %v928
        %v930 = vpop.f32.mrf.mxu0
        %v931 = vadd.f32 0.0, %v930
        %932 = vmatmul.bf16.gmra.mxu0 %v884
        %v933 = vpop.f32.mrf.mxu0
        %v934 = vadd.f32 0.0, %v933
        %v935 = vpop.f32.mrf.mxu0
        %v936 = vadd.f32 0.0, %v935
        %937 = vdwg.mxu0
        %v954 = vunpack.c.l.b16 %v434
        %v955 = vunpack.c.l.b16 %v435
        %v956 = vunpack.c.l.b16 %v436
        %v957 = vunpack.c.l.b16 %v437
        %v958 = vunpack.c.l.b16 %v438
        %v959 = vunpack.c.l.b16 %v439
        %v960 = vunpack.c.l.b16 %v440
        %v961 = vunpack.c.l.b16 %v441
        %v962 = vunpack.c.l.b16 %v442
        %v963 = vunpack.c.l.b16 %v443
        %v964 = vunpack.c.l.b16 %v444
        %v965 = vunpack.c.l.b16 %v445
        %v966 = vunpack.c.l.b16 %v446
        %v967 = vunpack.c.l.b16 %v447
        %v968 = vunpack.c.l.b16 %v448
        %v969 = vunpack.c.l.b16 %v449
        %v970 = vpack.c.b16 %v955, %v954
        %v971 = vpack.c.b16 %v957, %v956
        %v972 = vpack.c.b16 %v959, %v958
        %v973 = vpack.c.b16 %v961, %v960
        %v974 = vpack.c.b16 %v963, %v962
        %v975 = vpack.c.b16 %v965, %v964
        %v976 = vpack.c.b16 %v967, %v966
        %v977 = vpack.c.b16 %v969, %v968
        %v979 = vsel %vm512, %v970, 0
        %v982 = vsel %vm512, %v971, 0
        %v985 = vsel %vm512, %v972, 0
        %v988 = vsel %vm512, %v973, 0
        %v991 = vsel %vm512, %v974, 0
        %v994 = vsel %vm512, %v975, 0
        %v997 = vsel %vm512, %v976, 0
        %v1000 = vsel %vm512, %v977, 0
        %v1003 = vsel %vm537, %v470, 0
        %1005 = vmatpush.bf16.msra.mxu0 0
        %1006 = vmatpush.bf16.msra.mxu0 0
        %1007 = vmatpush.bf16.msra.mxu0 0
        %1008 = vmatpush.bf16.msra.mxu0 0
        %1009 = vmatpush.bf16.msra.mxu0 0
        %1010 = vmatpush.bf16.msra.mxu0 0
        %1011 = vmatpush.bf16.msra.mxu0 0
        %1012 = vmatpush.bf16.msra.mxu0 %v1003
        %1013 = vmatmul.bf16.gmra.mxu0 %v979
        %v1014 = vpop.f32.mrf.mxu0
        %v1015 = vadd.f32 0.0, %v1014
        %v1016 = vpop.f32.mrf.mxu0
        %v1017 = vadd.f32 0.0, %v1016
        %1018 = vmatmul.bf16.gmra.mxu0 %v982
        %v1019 = vpop.f32.mrf.mxu0
        %v1020 = vadd.f32 0.0, %v1019
        %v1021 = vpop.f32.mrf.mxu0
        %v1022 = vadd.f32 0.0, %v1021
        %1023 = vmatmul.bf16.gmra.mxu0 %v985
        %v1024 = vpop.f32.mrf.mxu0
        %v1025 = vadd.f32 0.0, %v1024
        %v1026 = vpop.f32.mrf.mxu0
        %v1027 = vadd.f32 0.0, %v1026
        %1028 = vmatmul.bf16.gmra.mxu0 %v988
        %v1029 = vpop.f32.mrf.mxu0
        %v1030 = vadd.f32 0.0, %v1029
        %v1031 = vpop.f32.mrf.mxu0
        %v1032 = vadd.f32 0.0, %v1031
        %1033 = vmatmul.bf16.gmra.mxu0 %v991
        %v1034 = vpop.f32.mrf.mxu0
        %v1035 = vadd.f32 0.0, %v1034
        %v1036 = vpop.f32.mrf.mxu0
        %v1037 = vadd.f32 0.0, %v1036
        %1038 = vmatmul.bf16.gmra.mxu0 %v994
        %v1039 = vpop.f32.mrf.mxu0
        %v1040 = vadd.f32 0.0, %v1039
        %v1041 = vpop.f32.mrf.mxu0
        %v1042 = vadd.f32 0.0, %v1041
        %1043 = vmatmul.bf16.gmra.mxu0 %v997
        %v1044 = vpop.f32.mrf.mxu0
        %v1045 = vadd.f32 0.0, %v1044
        %v1046 = vpop.f32.mrf.mxu0
        %v1047 = vadd.f32 0.0, %v1046
        %1048 = vmatmul.bf16.gmra.mxu0 %v1000
        %v1049 = vpop.f32.mrf.mxu0
        %v1050 = vadd.f32 0.0, %v1049
        %v1051 = vpop.f32.mrf.mxu0
        %v1052 = vadd.f32 0.0, %v1051
        %1053 = vdwg.mxu0
        %v1070 = vunpack.c.l.b16 %v450
        %v1071 = vunpack.c.l.b16 %v451
        %v1072 = vunpack.c.l.b16 %v452
        %v1073 = vunpack.c.l.b16 %v453
        %v1074 = vunpack.c.l.b16 %v454
        %v1075 = vunpack.c.l.b16 %v455
        %v1076 = vunpack.c.l.b16 %v456
        %v1077 = vunpack.c.l.b16 %v457
        %v1078 = vunpack.c.l.b16 %v458
        %v1079 = vunpack.c.l.b16 %v459
        %v1080 = vunpack.c.l.b16 %v460
        %v1081 = vunpack.c.l.b16 %v461
        %v1082 = vunpack.c.l.b16 %v462
        %v1083 = vunpack.c.l.b16 %v463
        %v1084 = vunpack.c.l.b16 %v464
        %v1085 = vunpack.c.l.b16 %v465
        %v1086 = vpack.c.b16 %v1071, %v1070
        %v1087 = vpack.c.b16 %v1073, %v1072
        %v1088 = vpack.c.b16 %v1075, %v1074
        %v1089 = vpack.c.b16 %v1077, %v1076
        %v1090 = vpack.c.b16 %v1079, %v1078
        %v1091 = vpack.c.b16 %v1081, %v1080
        %v1092 = vpack.c.b16 %v1083, %v1082
        %v1093 = vpack.c.b16 %v1085, %v1084
        %v1095 = vsel %vm512, %v1086, 0
        %v1098 = vsel %vm512, %v1087, 0
        %v1101 = vsel %vm512, %v1088, 0
        %v1104 = vsel %vm512, %v1089, 0
        %v1107 = vsel %vm512, %v1090, 0
        %v1110 = vsel %vm512, %v1091, 0
        %v1113 = vsel %vm512, %v1092, 0
        %v1116 = vsel %vm512, %v1093, 0
        %v1119 = vsel %vm537, %v471, 0
        %1121 = vmatpush.bf16.msra.mxu0 0
        %1122 = vmatpush.bf16.msra.mxu0 0
        %1123 = vmatpush.bf16.msra.mxu0 0
        %1124 = vmatpush.bf16.msra.mxu0 0
        %1125 = vmatpush.bf16.msra.mxu0 0
        %1126 = vmatpush.bf16.msra.mxu0 0
        %1127 = vmatpush.bf16.msra.mxu0 0
        %1128 = vmatpush.bf16.msra.mxu0 %v1119
        %1129 = vmatmul.bf16.gmra.mxu0 %v1095
        %v1130 = vpop.f32.mrf.mxu0
        %v1131 = vadd.f32 0.0, %v1130
        %v1132 = vpop.f32.mrf.mxu0
        %v1133 = vadd.f32 0.0, %v1132
        %1134 = vmatmul.bf16.gmra.mxu0 %v1098
        %v1135 = vpop.f32.mrf.mxu0
        %v1136 = vadd.f32 0.0, %v1135
        %v1137 = vpop.f32.mrf.mxu0
        %v1138 = vadd.f32 0.0, %v1137
        %1139 = vmatmul.bf16.gmra.mxu0 %v1101
        %v1140 = vpop.f32.mrf.mxu0
        %v1141 = vadd.f32 0.0, %v1140
        %v1142 = vpop.f32.mrf.mxu0
        %v1143 = vadd.f32 0.0, %v1142
        %1144 = vmatmul.bf16.gmra.mxu0 %v1104
        %v1145 = vpop.f32.mrf.mxu0
        %v1146 = vadd.f32 0.0, %v1145
        %v1147 = vpop.f32.mrf.mxu0
        %v1148 = vadd.f32 0.0, %v1147
        %1149 = vmatmul.bf16.gmra.mxu0 %v1107
        %v1150 = vpop.f32.mrf.mxu0
        %v1151 = vadd.f32 0.0, %v1150
        %v1152 = vpop.f32.mrf.mxu0
        %v1153 = vadd.f32 0.0, %v1152
        %1154 = vmatmul.bf16.gmra.mxu0 %v1110
        %v1155 = vpop.f32.mrf.mxu0
        %v1156 = vadd.f32 0.0, %v1155
        %v1157 = vpop.f32.mrf.mxu0
        %v1158 = vadd.f32 0.0, %v1157
        %1159 = vmatmul.bf16.gmra.mxu0 %v1113
        %v1160 = vpop.f32.mrf.mxu0
        %v1161 = vadd.f32 0.0, %v1160
        %v1162 = vpop.f32.mrf.mxu0
        %v1163 = vadd.f32 0.0, %v1162
        %1164 = vmatmul.bf16.gmra.mxu0 %v1116
        %v1165 = vpop.f32.mrf.mxu0
        %v1166 = vadd.f32 0.0, %v1165
        %v1167 = vpop.f32.mrf.mxu0
        %v1168 = vadd.f32 0.0, %v1167
        %1169 = vdwg.mxu0
        %v1170 = vmax.f32 %v551, 0.0
        %v1171 = vmax.f32 %v553, 0.0
        %v1172 = vmax.f32 %v556, 0.0
        %v1173 = vmax.f32 %v558, 0.0
        %v1174 = vmax.f32 %v561, 0.0
        %v1175 = vmax.f32 %v563, 0.0
        %v1176 = vmax.f32 %v566, 0.0
        %v1177 = vmax.f32 %v568, 0.0
        %v1178 = vmax.f32 %v571, 0.0
        %v1179 = vmax.f32 %v573, 0.0
        %v1180 = vmax.f32 %v576, 0.0
        %v1181 = vmax.f32 %v578, 0.0
        %v1182 = vmax.f32 %v581, 0.0
        %v1183 = vmax.f32 %v583, 0.0
        %v1184 = vmax.f32 %v586, 0.0
        %v1185 = vmax.f32 %v588, 0.0
        %v1186 = vmax.f32 %v667, 0.0
        %v1187 = vmax.f32 %v669, 0.0
        %v1188 = vmax.f32 %v672, 0.0
        %v1189 = vmax.f32 %v674, 0.0
        %v1190 = vmax.f32 %v677, 0.0
        %v1191 = vmax.f32 %v679, 0.0
        %v1192 = vmax.f32 %v682, 0.0
        %v1193 = vmax.f32 %v684, 0.0
        %v1194 = vmax.f32 %v687, 0.0
        %v1195 = vmax.f32 %v689, 0.0
        %v1196 = vmax.f32 %v692, 0.0
        %v1197 = vmax.f32 %v694, 0.0
        %v1198 = vmax.f32 %v697, 0.0
        %v1199 = vmax.f32 %v699, 0.0
        %v1200 = vmax.f32 %v702, 0.0
        %v1201 = vmax.f32 %v704, 0.0
        %v1202 = vmax.f32 %v783, 0.0
        %v1203 = vmax.f32 %v785, 0.0
        %v1204 = vmax.f32 %v788, 0.0
        %v1205 = vmax.f32 %v790, 0.0
        %v1206 = vmax.f32 %v793, 0.0
        %v1207 = vmax.f32 %v795, 0.0
        %v1208 = vmax.f32 %v798, 0.0
        %v1209 = vmax.f32 %v800, 0.0
        %v1210 = vmax.f32 %v803, 0.0
        %v1211 = vmax.f32 %v805, 0.0
        %v1212 = vmax.f32 %v808, 0.0
        %v1213 = vmax.f32 %v810, 0.0
        %v1214 = vmax.f32 %v813, 0.0
        %v1215 = vmax.f32 %v815, 0.0
        %v1216 = vmax.f32 %v818, 0.0
        %v1217 = vmax.f32 %v820, 0.0
        %v1218 = vmax.f32 %v899, 0.0
        %v1219 = vmax.f32 %v901, 0.0
        %v1220 = vmax.f32 %v904, 0.0
        %v1221 = vmax.f32 %v906, 0.0
        %v1222 = vmax.f32 %v909, 0.0
        %v1223 = vmax.f32 %v911, 0.0
        %v1224 = vmax.f32 %v914, 0.0
        %v1225 = vmax.f32 %v916, 0.0
        %v1226 = vmax.f32 %v919, 0.0
        %v1227 = vmax.f32 %v921, 0.0
        %v1228 = vmax.f32 %v924, 0.0
        %v1229 = vmax.f32 %v926, 0.0
        %v1230 = vmax.f32 %v929, 0.0
        %v1231 = vmax.f32 %v931, 0.0
        %v1232 = vmax.f32 %v934, 0.0
        %v1233 = vmax.f32 %v936, 0.0
        %v1234 = vmax.f32 %v1015, 0.0
        %v1235 = vmax.f32 %v1017, 0.0
        %v1236 = vmax.f32 %v1020, 0.0
        %v1237 = vmax.f32 %v1022, 0.0
        %v1238 = vmax.f32 %v1025, 0.0
        %v1239 = vmax.f32 %v1027, 0.0
        %v1240 = vmax.f32 %v1030, 0.0
        %v1241 = vmax.f32 %v1032, 0.0
        %v1242 = vmax.f32 %v1035, 0.0
        %v1243 = vmax.f32 %v1037, 0.0
        %v1244 = vmax.f32 %v1040, 0.0
        %v1245 = vmax.f32 %v1042, 0.0
        %v1246 = vmax.f32 %v1045, 0.0
        %v1247 = vmax.f32 %v1047, 0.0
        %v1248 = vmax.f32 %v1050, 0.0
        %v1249 = vmax.f32 %v1052, 0.0
        %v1250 = vmax.f32 %v1131, 0.0
        %v1251 = vmax.f32 %v1133, 0.0
        %v1252 = vmax.f32 %v1136, 0.0
        %v1253 = vmax.f32 %v1138, 0.0
        %v1254 = vmax.f32 %v1141, 0.0
        %v1255 = vmax.f32 %v1143, 0.0
        %v1256 = vmax.f32 %v1146, 0.0
        %v1257 = vmax.f32 %v1148, 0.0
        %v1258 = vmax.f32 %v1151, 0.0
        %v1259 = vmax.f32 %v1153, 0.0
        %v1260 = vmax.f32 %v1156, 0.0
        %v1261 = vmax.f32 %v1158, 0.0
        %v1262 = vmax.f32 %v1161, 0.0
        %v1263 = vmax.f32 %v1163, 0.0
        %v1264 = vmax.f32 %v1166, 0.0
        %v1265 = vmax.f32 %v1168, 0.0
        %vm1266 = vcmask 261120
        %v1267 = vsel %vm1266, %v1170, 0.0
        %v1268 = vsel %vm1266, %v1171, 0.0
        %v1269 = vadd.f32 %v1267, %v1268
        %v1270 = vsel %vm1266, %v1172, 0.0
        %v1271 = vadd.f32 %v1269, %v1270
        %v1272 = vsel %vm1266, %v1173, 0.0
        %v1273 = vadd.f32 %v1271, %v1272
        %v1274 = vsel %vm1266, %v1174, 0.0
        %v1275 = vadd.f32 %v1273, %v1274
        %v1276 = vsel %vm1266, %v1175, 0.0
        %v1277 = vadd.f32 %v1275, %v1276
        %v1278 = vsel %vm1266, %v1176, 0.0
        %v1279 = vadd.f32 %v1277, %v1278
        %v1280 = vsel %vm1266, %v1177, 0.0
        %v1281 = vadd.f32 %v1279, %v1280
        %v1282 = vrot.slane %v1281, 4
        %v1283 = vadd.f32 %v1281, %v1282
        %v1284 = vrot.slane %v1283, 2
        %v1285 = vadd.f32 %v1283, %v1284
        %v1286 = vrot.slane %v1285, 1
        %v1287 = vadd.f32 %v1285, %v1286
        %v1288 = vsel %vm1266, %v1178, 0.0
        %v1289 = vsel %vm1266, %v1179, 0.0
        %v1290 = vadd.f32 %v1288, %v1289
        %v1291 = vsel %vm1266, %v1180, 0.0
        %v1292 = vadd.f32 %v1290, %v1291
        %v1293 = vsel %vm1266, %v1181, 0.0
        %v1294 = vadd.f32 %v1292, %v1293
        %v1295 = vsel %vm1266, %v1182, 0.0
        %v1296 = vadd.f32 %v1294, %v1295
        %v1297 = vsel %vm1266, %v1183, 0.0
        %v1298 = vadd.f32 %v1296, %v1297
        %v1299 = vsel %vm1266, %v1184, 0.0
        %v1300 = vadd.f32 %v1298, %v1299
        %v1301 = vsel %vm1266, %v1185, 0.0
        %v1302 = vadd.f32 %v1300, %v1301
        %v1303 = vrot.slane %v1302, 4
        %v1304 = vadd.f32 %v1302, %v1303
        %v1305 = vrot.slane %v1304, 2
        %v1306 = vadd.f32 %v1304, %v1305
        %v1307 = vrot.slane %v1306, 1
        %v1308 = vadd.f32 %v1306, %v1307
        %v1309 = vsel %vm1266, %v1186, 0.0
        %v1310 = vsel %vm1266, %v1187, 0.0
        %v1311 = vadd.f32 %v1309, %v1310
        %v1312 = vsel %vm1266, %v1188, 0.0
        %v1313 = vadd.f32 %v1311, %v1312
        %v1314 = vsel %vm1266, %v1189, 0.0
        %v1315 = vadd.f32 %v1313, %v1314
        %v1316 = vsel %vm1266, %v1190, 0.0
        %v1317 = vadd.f32 %v1315, %v1316
        %v1318 = vsel %vm1266, %v1191, 0.0
        %v1319 = vadd.f32 %v1317, %v1318
        %v1320 = vsel %vm1266, %v1192, 0.0
        %v1321 = vadd.f32 %v1319, %v1320
        %v1322 = vsel %vm1266, %v1193, 0.0
        %v1323 = vadd.f32 %v1321, %v1322
        %v1324 = vrot.slane %v1323, 4
        %v1325 = vadd.f32 %v1323, %v1324
        %v1326 = vrot.slane %v1325, 2
        %v1327 = vadd.f32 %v1325, %v1326
        %v1328 = vrot.slane %v1327, 1
        %v1329 = vadd.f32 %v1327, %v1328
        %v1330 = vsel %vm1266, %v1194, 0.0
        %v1331 = vsel %vm1266, %v1195, 0.0
        %v1332 = vadd.f32 %v1330, %v1331
        %v1333 = vsel %vm1266, %v1196, 0.0
        %v1334 = vadd.f32 %v1332, %v1333
        %v1335 = vsel %vm1266, %v1197, 0.0
        %v1336 = vadd.f32 %v1334, %v1335
        %v1337 = vsel %vm1266, %v1198, 0.0
        %v1338 = vadd.f32 %v1336, %v1337
        %v1339 = vsel %vm1266, %v1199, 0.0
        %v1340 = vadd.f32 %v1338, %v1339
        %v1341 = vsel %vm1266, %v1200, 0.0
        %v1342 = vadd.f32 %v1340, %v1341
        %v1343 = vsel %vm1266, %v1201, 0.0
        %v1344 = vadd.f32 %v1342, %v1343
        %v1345 = vrot.slane %v1344, 4
        %v1346 = vadd.f32 %v1344, %v1345
        %v1347 = vrot.slane %v1346, 2
        %v1348 = vadd.f32 %v1346, %v1347
        %v1349 = vrot.slane %v1348, 1
        %v1350 = vadd.f32 %v1348, %v1349
        %v1351 = vsel %vm1266, %v1202, 0.0
        %v1352 = vsel %vm1266, %v1203, 0.0
        %v1353 = vadd.f32 %v1351, %v1352
        %v1354 = vsel %vm1266, %v1204, 0.0
        %v1355 = vadd.f32 %v1353, %v1354
        %v1356 = vsel %vm1266, %v1205, 0.0
        %v1357 = vadd.f32 %v1355, %v1356
        %v1358 = vsel %vm1266, %v1206, 0.0
        %v1359 = vadd.f32 %v1357, %v1358
        %v1360 = vsel %vm1266, %v1207, 0.0
        %v1361 = vadd.f32 %v1359, %v1360
        %v1362 = vsel %vm1266, %v1208, 0.0
        %v1363 = vadd.f32 %v1361, %v1362
        %v1364 = vsel %vm1266, %v1209, 0.0
        %v1365 = vadd.f32 %v1363, %v1364
        %v1366 = vrot.slane %v1365, 4
        %v1367 = vadd.f32 %v1365, %v1366
        %v1368 = vrot.slane %v1367, 2
        %v1369 = vadd.f32 %v1367, %v1368
        %v1370 = vrot.slane %v1369, 1
        %v1371 = vadd.f32 %v1369, %v1370
        %v1372 = vsel %vm1266, %v1210, 0.0
        %v1373 = vsel %vm1266, %v1211, 0.0
        %v1374 = vadd.f32 %v1372, %v1373
        %v1375 = vsel %vm1266, %v1212, 0.0
        %v1376 = vadd.f32 %v1374, %v1375
        %v1377 = vsel %vm1266, %v1213, 0.0
        %v1378 = vadd.f32 %v1376, %v1377
        %v1379 = vsel %vm1266, %v1214, 0.0
        %v1380 = vadd.f32 %v1378, %v1379
        %v1381 = vsel %vm1266, %v1215, 0.0
        %v1382 = vadd.f32 %v1380, %v1381
        %v1383 = vsel %vm1266, %v1216, 0.0
        %v1384 = vadd.f32 %v1382, %v1383
        %v1385 = vsel %vm1266, %v1217, 0.0
        %v1386 = vadd.f32 %v1384, %v1385
        %v1387 = vrot.slane %v1386, 4
        %v1388 = vadd.f32 %v1386, %v1387
        %v1389 = vrot.slane %v1388, 2
        %v1390 = vadd.f32 %v1388, %v1389
        %v1391 = vrot.slane %v1390, 1
        %v1392 = vadd.f32 %v1390, %v1391
        %v1393 = vsel %vm1266, %v1218, 0.0
        %v1394 = vsel %vm1266, %v1219, 0.0
        %v1395 = vadd.f32 %v1393, %v1394
        %v1396 = vsel %vm1266, %v1220, 0.0
        %v1397 = vadd.f32 %v1395, %v1396
        %v1398 = vsel %vm1266, %v1221, 0.0
        %v1399 = vadd.f32 %v1397, %v1398
        %v1400 = vsel %vm1266, %v1222, 0.0
        %v1401 = vadd.f32 %v1399, %v1400
        %v1402 = vsel %vm1266, %v1223, 0.0
        %v1403 = vadd.f32 %v1401, %v1402
        %v1404 = vsel %vm1266, %v1224, 0.0
        %v1405 = vadd.f32 %v1403, %v1404
        %v1406 = vsel %vm1266, %v1225, 0.0
        %v1407 = vadd.f32 %v1405, %v1406
        %v1408 = vrot.slane %v1407, 4
        %v1409 = vadd.f32 %v1407, %v1408
        %v1410 = vrot.slane %v1409, 2
        %v1411 = vadd.f32 %v1409, %v1410
        %v1412 = vrot.slane %v1411, 1
        %v1413 = vadd.f32 %v1411, %v1412
        %v1414 = vsel %vm1266, %v1226, 0.0
        %v1415 = vsel %vm1266, %v1227, 0.0
        %v1416 = vadd.f32 %v1414, %v1415
        %v1417 = vsel %vm1266, %v1228, 0.0
        %v1418 = vadd.f32 %v1416, %v1417
        %v1419 = vsel %vm1266, %v1229, 0.0
        %v1420 = vadd.f32 %v1418, %v1419
        %v1421 = vsel %vm1266, %v1230, 0.0
        %v1422 = vadd.f32 %v1420, %v1421
        %v1423 = vsel %vm1266, %v1231, 0.0
        %v1424 = vadd.f32 %v1422, %v1423
        %v1425 = vsel %vm1266, %v1232, 0.0
        %v1426 = vadd.f32 %v1424, %v1425
        %v1427 = vsel %vm1266, %v1233, 0.0
        %v1428 = vadd.f32 %v1426, %v1427
        %v1429 = vrot.slane %v1428, 4
        %v1430 = vadd.f32 %v1428, %v1429
        %v1431 = vrot.slane %v1430, 2
        %v1432 = vadd.f32 %v1430, %v1431
        %v1433 = vrot.slane %v1432, 1
        %v1434 = vadd.f32 %v1432, %v1433
        %v1435 = vsel %vm1266, %v1234, 0.0
        %v1436 = vsel %vm1266, %v1235, 0.0
        %v1437 = vadd.f32 %v1435, %v1436
        %v1438 = vsel %vm1266, %v1236, 0.0
        %v1439 = vadd.f32 %v1437, %v1438
        %v1440 = vsel %vm1266, %v1237, 0.0
        %v1441 = vadd.f32 %v1439, %v1440
        %v1442 = vsel %vm1266, %v1238, 0.0
        %v1443 = vadd.f32 %v1441, %v1442
        %v1444 = vsel %vm1266, %v1239, 0.0
        %v1445 = vadd.f32 %v1443, %v1444
        %v1446 = vsel %vm1266, %v1240, 0.0
        %v1447 = vadd.f32 %v1445, %v1446
        %v1448 = vsel %vm1266, %v1241, 0.0
        %v1449 = vadd.f32 %v1447, %v1448
        %v1450 = vrot.slane %v1449, 4
        %v1451 = vadd.f32 %v1449, %v1450
        %v1452 = vrot.slane %v1451, 2
        %v1453 = vadd.f32 %v1451, %v1452
        %v1454 = vrot.slane %v1453, 1
        %v1455 = vadd.f32 %v1453, %v1454
        %v1456 = vsel %vm1266, %v1242, 0.0
        %v1457 = vsel %vm1266, %v1243, 0.0
        %v1458 = vadd.f32 %v1456, %v1457
        %v1459 = vsel %vm1266, %v1244, 0.0
        %v1460 = vadd.f32 %v1458, %v1459
        %v1461 = vsel %vm1266, %v1245, 0.0
        %v1462 = vadd.f32 %v1460, %v1461
        %v1463 = vsel %vm1266, %v1246, 0.0
        %v1464 = vadd.f32 %v1462, %v1463
        %v1465 = vsel %vm1266, %v1247, 0.0
        %v1466 = vadd.f32 %v1464, %v1465
        %v1467 = vsel %vm1266, %v1248, 0.0
        %v1468 = vadd.f32 %v1466, %v1467
        %v1469 = vsel %vm1266, %v1249, 0.0
        %v1470 = vadd.f32 %v1468, %v1469
        %v1471 = vrot.slane %v1470, 4
        %v1472 = vadd.f32 %v1470, %v1471
        %v1473 = vrot.slane %v1472, 2
        %v1474 = vadd.f32 %v1472, %v1473
        %v1475 = vrot.slane %v1474, 1
        %v1476 = vadd.f32 %v1474, %v1475
        %v1477 = vsel %vm1266, %v1250, 0.0
        %v1478 = vsel %vm1266, %v1251, 0.0
        %v1479 = vadd.f32 %v1477, %v1478
        %v1480 = vsel %vm1266, %v1252, 0.0
        %v1481 = vadd.f32 %v1479, %v1480
        %v1482 = vsel %vm1266, %v1253, 0.0
        %v1483 = vadd.f32 %v1481, %v1482
        %v1484 = vsel %vm1266, %v1254, 0.0
        %v1485 = vadd.f32 %v1483, %v1484
        %v1486 = vsel %vm1266, %v1255, 0.0
        %v1487 = vadd.f32 %v1485, %v1486
        %v1488 = vsel %vm1266, %v1256, 0.0
        %v1489 = vadd.f32 %v1487, %v1488
        %v1490 = vsel %vm1266, %v1257, 0.0
        %v1491 = vadd.f32 %v1489, %v1490
        %v1492 = vrot.slane %v1491, 4
        %v1493 = vadd.f32 %v1491, %v1492
        %v1494 = vrot.slane %v1493, 2
        %v1495 = vadd.f32 %v1493, %v1494
        %v1496 = vrot.slane %v1495, 1
        %v1497 = vadd.f32 %v1495, %v1496
        %v1498 = vsel %vm1266, %v1258, 0.0
        %v1499 = vsel %vm1266, %v1259, 0.0
        %v1500 = vadd.f32 %v1498, %v1499
        %v1501 = vsel %vm1266, %v1260, 0.0
        %v1502 = vadd.f32 %v1500, %v1501
        %v1503 = vsel %vm1266, %v1261, 0.0
        %v1504 = vadd.f32 %v1502, %v1503
        %v1505 = vsel %vm1266, %v1262, 0.0
        %v1506 = vadd.f32 %v1504, %v1505
        %v1507 = vsel %vm1266, %v1263, 0.0
        %v1508 = vadd.f32 %v1506, %v1507
        %v1509 = vsel %vm1266, %v1264, 0.0
        %v1510 = vadd.f32 %v1508, %v1509
        %v1511 = vsel %vm1266, %v1265, 0.0
        %v1512 = vadd.f32 %v1510, %v1511
        %v1513 = vrot.slane %v1512, 4
        %v1514 = vadd.f32 %v1512, %v1513
        %v1515 = vrot.slane %v1514, 2
        %v1516 = vadd.f32 %v1514, %v1515
        %v1517 = vrot.slane %v1516, 1
        %v1518 = vadd.f32 %v1516, %v1517
        %v1519 = vpack.c.bf16 %v1287, %v1287
        %v1520 = vpack.c.bf16 %v1308, %v1308
        %v1521 = vpack.c.bf16 %v1329, %v1329
        %v1522 = vpack.c.bf16 %v1350, %v1350
        %v1523 = vpack.c.bf16 %v1371, %v1371
        %v1524 = vpack.c.bf16 %v1392, %v1392
        %v1525 = vpack.c.bf16 %v1413, %v1413
        %v1526 = vpack.c.bf16 %v1434, %v1434
        %v1527 = vpack.c.bf16 %v1455, %v1455
        %v1528 = vpack.c.bf16 %v1476, %v1476
        %v1529 = vpack.c.bf16 %v1497, %v1497
        %v1530 = vpack.c.bf16 %v1518, %v1518
        %v1531 = vld [vmem:[%s348] sm:$0xff]
        %v1532 = vld [vmem:[%s348 + $0x8] sm:$0xff]
        %v1533 = vld [vmem:[%s348 + $0x10] sm:$0xff]
        %v1534 = vld [vmem:[%s348 + $0x18] sm:$0xff]
        %v1535 = vld [vmem:[%s348 + $0x20] sm:$0xff]
        %v1536 = vld [vmem:[%s348 + $0x28] sm:$0xff]
        %v1537 = vld [vmem:[%s348 + $0x30] sm:$0xff]
        %v1538 = vld [vmem:[%s348 + $0x38] sm:$0xff]
        %v1539 = vld [vmem:[%s348 + $0x40] sm:$0xff]
        %v1540 = vld [vmem:[%s348 + $0x48] sm:$0xff]
        %v1541 = vld [vmem:[%s348 + $0x50] sm:$0xff]
        %v1542 = vld [vmem:[%s348 + $0x58] sm:$0xff]
        %v1543 = vld [vmem:[%s348 + $0x60] sm:$0xff]
        %v1544 = vld [vmem:[%s348 + $0x68] sm:$0xff]
        %v1545 = vld [vmem:[%s348 + $0x70] sm:$0xff]
        %v1546 = vld [vmem:[%s348 + $0x78] sm:$0xff]
        %v1547 = vld [vmem:[%s348 + $0x80] sm:$0xff]
        %v1548 = vld [vmem:[%s348 + $0x88] sm:$0xff]
        %v1549 = vld [vmem:[%s348 + $0x90] sm:$0xff]
        %v1550 = vld [vmem:[%s348 + $0x98] sm:$0xff]
        %v1551 = vld [vmem:[%s348 + $0xa0] sm:$0xff]
        %v1552 = vld [vmem:[%s348 + $0xa8] sm:$0xff]
        %v1553 = vld [vmem:[%s348 + $0xb0] sm:$0xff]
        %v1554 = vld [vmem:[%s348 + $0xb8] sm:$0xff]
        %v1555 = vld [vmem:[%s354] sm:$0x3]
        %v1556 = vld [vmem:[%s354 + $0x2] sm:$0x3]
        %v1557 = vld [vmem:[%s354 + $0x4] sm:$0x3]
        %v1558 = vld [vmem:[%s354 + $0x6] sm:$0x3]
        %v1559 = vld [vmem:[%s354 + $0x8] sm:$0x3]
        %v1560 = vld [vmem:[%s354 + $0xa] sm:$0x3]
        %v1567 = vperm.slane %v1555, 0
        %v1568 = vperm.slane %v1555, 1
        %v1569 = vperm.slane %v1556, 0
        %v1570 = vperm.slane %v1556, 1
        %v1571 = vperm.slane %v1557, 0
        %v1572 = vperm.slane %v1557, 1
        %v1573 = vperm.slane %v1558, 0
        %v1574 = vperm.slane %v1558, 1
        %v1575 = vperm.slane %v1559, 0
        %v1576 = vperm.slane %v1559, 1
        %v1577 = vperm.slane %v1560, 0
        %v1578 = vperm.slane %v1560, 1
        %v1593 = vperm.slane %v1519, 0
        %v1594 = vperm.slane %v1520, 0
        %v1595 = vunpack.c.l.b16 %v1593
        %v1596 = vunpack.c.l.b16 %v1594
        %vm1597 = vcmask 1041409
        %v1598 = vsel %vm1597, %v1596, %v1595
        %v1599 = vpack.c.b16 %v1598, %v1598
        %v1604 = vunpack.c.l.b16 %v1531
        %v1605 = vunpack.c.h.b16 %v1531
        %v1606 = vunpack.c.l.b16 %v1532
        %v1607 = vunpack.c.h.b16 %v1532
        %v1608 = vunpack.c.l.b16 %v1533
        %v1609 = vunpack.c.h.b16 %v1533
        %v1610 = vunpack.c.l.b16 %v1534
        %v1611 = vunpack.c.h.b16 %v1534
        %v1612 = vpack.c.b16 %v1606, %v1604
        %v1613 = vpack.c.b16 %v1607, %v1605
        %v1614 = vpack.c.b16 %v1610, %v1608
        %v1615 = vpack.c.b16 %v1611, %v1609
        %v1621 = vsel %vm1266, %v1599, 0
        %1623 = vmatpush.bf16.msra.mxu0 0
        %1624 = vmatpush.bf16.msra.mxu0 0
        %1625 = vmatpush.bf16.msra.mxu0 0
        %1626 = vmatpush.bf16.msra.mxu0 0
        %1627 = vmatpush.bf16.msra.mxu0 0
        %1628 = vmatpush.bf16.msra.mxu0 0
        %1629 = vmatpush.bf16.msra.mxu0 %v1614
        %1630 = vmatpush.bf16.msra.mxu0 %v1612
        %1631 = vmatmul.bf16.gmra.mxu0 %v1621
        %v1632 = vpop.f32.mrf.mxu0
        %v1633 = vadd.f32 %v1567, %v1632
        %v1634 = vpop.f32.mrf.mxu0
        %1635 = vdwg.mxu0
        %1636 = vmatpush.bf16.msra.mxu0 0
        %1637 = vmatpush.bf16.msra.mxu0 0
        %1638 = vmatpush.bf16.msra.mxu0 0
        %1639 = vmatpush.bf16.msra.mxu0 0
        %1640 = vmatpush.bf16.msra.mxu0 0
        %1641 = vmatpush.bf16.msra.mxu0 0
        %1642 = vmatpush.bf16.msra.mxu0 %v1615
        %1643 = vmatpush.bf16.msra.mxu0 %v1613
        %1644 = vmatmul.bf16.gmra.mxu0 %v1621
        %v1645 = vpop.f32.mrf.mxu0
        %v1646 = vadd.f32 %v1568, %v1645
        %v1647 = vpop.f32.mrf.mxu0
        %1648 = vdwg.mxu0
        %v1651 = vperm.slane %v1521, 0
        %v1652 = vperm.slane %v1522, 0
        %v1653 = vunpack.c.l.b16 %v1651
        %v1654 = vunpack.c.l.b16 %v1652
        %v1655 = vsel %vm1597, %v1654, %v1653
        %v1656 = vpack.c.b16 %v1655, %v1655
        %v1661 = vunpack.c.l.b16 %v1535
        %v1662 = vunpack.c.h.b16 %v1535
        %v1663 = vunpack.c.l.b16 %v1536
        %v1664 = vunpack.c.h.b16 %v1536
        %v1665 = vunpack.c.l.b16 %v1537
        %v1666 = vunpack.c.h.b16 %v1537
        %v1667 = vunpack.c.l.b16 %v1538
        %v1668 = vunpack.c.h.b16 %v1538
        %v1669 = vpack.c.b16 %v1663, %v1661
        %v1670 = vpack.c.b16 %v1664, %v1662
        %v1671 = vpack.c.b16 %v1667, %v1665
        %v1672 = vpack.c.b16 %v1668, %v1666
        %v1678 = vsel %vm1266, %v1656, 0
        %1680 = vmatpush.bf16.msra.mxu0 0
        %1681 = vmatpush.bf16.msra.mxu0 0
        %1682 = vmatpush.bf16.msra.mxu0 0
        %1683 = vmatpush.bf16.msra.mxu0 0
        %1684 = vmatpush.bf16.msra.mxu0 0
        %1685 = vmatpush.bf16.msra.mxu0 0
        %1686 = vmatpush.bf16.msra.mxu0 %v1671
        %1687 = vmatpush.bf16.msra.mxu0 %v1669
        %1688 = vmatmul.bf16.gmra.mxu0 %v1678
        %v1689 = vpop.f32.mrf.mxu0
        %v1690 = vadd.f32 %v1569, %v1689
        %v1691 = vpop.f32.mrf.mxu0
        %1692 = vdwg.mxu0
        %1693 = vmatpush.bf16.msra.mxu0 0
        %1694 = vmatpush.bf16.msra.mxu0 0
        %1695 = vmatpush.bf16.msra.mxu0 0
        %1696 = vmatpush.bf16.msra.mxu0 0
        %1697 = vmatpush.bf16.msra.mxu0 0
        %1698 = vmatpush.bf16.msra.mxu0 0
        %1699 = vmatpush.bf16.msra.mxu0 %v1672
        %1700 = vmatpush.bf16.msra.mxu0 %v1670
        %1701 = vmatmul.bf16.gmra.mxu0 %v1678
        %v1702 = vpop.f32.mrf.mxu0
        %v1703 = vadd.f32 %v1570, %v1702
        %v1704 = vpop.f32.mrf.mxu0
        %1705 = vdwg.mxu0
        %v1708 = vperm.slane %v1523, 0
        %v1709 = vperm.slane %v1524, 0
        %v1710 = vunpack.c.l.b16 %v1708
        %v1711 = vunpack.c.l.b16 %v1709
        %v1712 = vsel %vm1597, %v1711, %v1710
        %v1713 = vpack.c.b16 %v1712, %v1712
        %v1718 = vunpack.c.l.b16 %v1539
        %v1719 = vunpack.c.h.b16 %v1539
        %v1720 = vunpack.c.l.b16 %v1540
        %v1721 = vunpack.c.h.b16 %v1540
        %v1722 = vunpack.c.l.b16 %v1541
        %v1723 = vunpack.c.h.b16 %v1541
        %v1724 = vunpack.c.l.b16 %v1542
        %v1725 = vunpack.c.h.b16 %v1542
        %v1726 = vpack.c.b16 %v1720, %v1718
        %v1727 = vpack.c.b16 %v1721, %v1719
        %v1728 = vpack.c.b16 %v1724, %v1722
        %v1729 = vpack.c.b16 %v1725, %v1723
        %v1735 = vsel %vm1266, %v1713, 0
        %1737 = vmatpush.bf16.msra.mxu0 0
        %1738 = vmatpush.bf16.msra.mxu0 0
        %1739 = vmatpush.bf16.msra.mxu0 0
        %1740 = vmatpush.bf16.msra.mxu0 0
        %1741 = vmatpush.bf16.msra.mxu0 0
        %1742 = vmatpush.bf16.msra.mxu0 0
        %1743 = vmatpush.bf16.msra.mxu0 %v1728
        %1744 = vmatpush.bf16.msra.mxu0 %v1726
        %1745 = vmatmul.bf16.gmra.mxu0 %v1735
        %v1746 = vpop.f32.mrf.mxu0
        %v1747 = vadd.f32 %v1571, %v1746
        %v1748 = vpop.f32.mrf.mxu0
        %1749 = vdwg.mxu0
        %1750 = vmatpush.bf16.msra.mxu0 0
        %1751 = vmatpush.bf16.msra.mxu0 0
        %1752 = vmatpush.bf16.msra.mxu0 0
        %1753 = vmatpush.bf16.msra.mxu0 0
        %1754 = vmatpush.bf16.msra.mxu0 0
        %1755 = vmatpush.bf16.msra.mxu0 0
        %1756 = vmatpush.bf16.msra.mxu0 %v1729
        %1757 = vmatpush.bf16.msra.mxu0 %v1727
        %1758 = vmatmul.bf16.gmra.mxu0 %v1735
        %v1759 = vpop.f32.mrf.mxu0
        %v1760 = vadd.f32 %v1572, %v1759
        %v1761 = vpop.f32.mrf.mxu0
        %1762 = vdwg.mxu0
        %v1765 = vperm.slane %v1525, 0
        %v1766 = vperm.slane %v1526, 0
        %v1767 = vunpack.c.l.b16 %v1765
        %v1768 = vunpack.c.l.b16 %v1766
        %v1769 = vsel %vm1597, %v1768, %v1767
        %v1770 = vpack.c.b16 %v1769, %v1769
        %v1775 = vunpack.c.l.b16 %v1543
        %v1776 = vunpack.c.h.b16 %v1543
        %v1777 = vunpack.c.l.b16 %v1544
        %v1778 = vunpack.c.h.b16 %v1544
        %v1779 = vunpack.c.l.b16 %v1545
        %v1780 = vunpack.c.h.b16 %v1545
        %v1781 = vunpack.c.l.b16 %v1546
        %v1782 = vunpack.c.h.b16 %v1546
        %v1783 = vpack.c.b16 %v1777, %v1775
        %v1784 = vpack.c.b16 %v1778, %v1776
        %v1785 = vpack.c.b16 %v1781, %v1779
        %v1786 = vpack.c.b16 %v1782, %v1780
        %v1792 = vsel %vm1266, %v1770, 0
        %1794 = vmatpush.bf16.msra.mxu0 0
        %1795 = vmatpush.bf16.msra.mxu0 0
        %1796 = vmatpush.bf16.msra.mxu0 0
        %1797 = vmatpush.bf16.msra.mxu0 0
        %1798 = vmatpush.bf16.msra.mxu0 0
        %1799 = vmatpush.bf16.msra.mxu0 0
        %1800 = vmatpush.bf16.msra.mxu0 %v1785
        %1801 = vmatpush.bf16.msra.mxu0 %v1783
        %1802 = vmatmul.bf16.gmra.mxu0 %v1792
        %v1803 = vpop.f32.mrf.mxu0
        %v1804 = vadd.f32 %v1573, %v1803
        %v1805 = vpop.f32.mrf.mxu0
        %1806 = vdwg.mxu0
        %1807 = vmatpush.bf16.msra.mxu0 0
        %1808 = vmatpush.bf16.msra.mxu0 0
        %1809 = vmatpush.bf16.msra.mxu0 0
        %1810 = vmatpush.bf16.msra.mxu0 0
        %1811 = vmatpush.bf16.msra.mxu0 0
        %1812 = vmatpush.bf16.msra.mxu0 0
        %1813 = vmatpush.bf16.msra.mxu0 %v1786
        %1814 = vmatpush.bf16.msra.mxu0 %v1784
        %1815 = vmatmul.bf16.gmra.mxu0 %v1792
        %v1816 = vpop.f32.mrf.mxu0
        %v1817 = vadd.f32 %v1574, %v1816
        %v1818 = vpop.f32.mrf.mxu0
        %1819 = vdwg.mxu0
        %v1822 = vperm.slane %v1527, 0
        %v1823 = vperm.slane %v1528, 0
        %v1824 = vunpack.c.l.b16 %v1822
        %v1825 = vunpack.c.l.b16 %v1823
        %v1826 = vsel %vm1597, %v1825, %v1824
        %v1827 = vpack.c.b16 %v1826, %v1826
        %v1832 = vunpack.c.l.b16 %v1547
        %v1833 = vunpack.c.h.b16 %v1547
        %v1834 = vunpack.c.l.b16 %v1548
        %v1835 = vunpack.c.h.b16 %v1548
        %v1836 = vunpack.c.l.b16 %v1549
        %v1837 = vunpack.c.h.b16 %v1549
        %v1838 = vunpack.c.l.b16 %v1550
        %v1839 = vunpack.c.h.b16 %v1550
        %v1840 = vpack.c.b16 %v1834, %v1832
        %v1841 = vpack.c.b16 %v1835, %v1833
        %v1842 = vpack.c.b16 %v1838, %v1836
        %v1843 = vpack.c.b16 %v1839, %v1837
        %v1849 = vsel %vm1266, %v1827, 0
        %1851 = vmatpush.bf16.msra.mxu0 0
        %1852 = vmatpush.bf16.msra.mxu0 0
        %1853 = vmatpush.bf16.msra.mxu0 0
        %1854 = vmatpush.bf16.msra.mxu0 0
        %1855 = vmatpush.bf16.msra.mxu0 0
        %1856 = vmatpush.bf16.msra.mxu0 0
        %1857 = vmatpush.bf16.msra.mxu0 %v1842
        %1858 = vmatpush.bf16.msra.mxu0 %v1840
        %1859 = vmatmul.bf16.gmra.mxu0 %v1849
        %v1860 = vpop.f32.mrf.mxu0
        %v1861 = vadd.f32 %v1575, %v1860
        %v1862 = vpop.f32.mrf.mxu0
        %1863 = vdwg.mxu0
        %1864 = vmatpush.bf16.msra.mxu0 0
        %1865 = vmatpush.bf16.msra.mxu0 0
        %1866 = vmatpush.bf16.msra.mxu0 0
        %1867 = vmatpush.bf16.msra.mxu0 0
        %1868 = vmatpush.bf16.msra.mxu0 0
        %1869 = vmatpush.bf16.msra.mxu0 0
        %1870 = vmatpush.bf16.msra.mxu0 %v1843
        %1871 = vmatpush.bf16.msra.mxu0 %v1841
        %1872 = vmatmul.bf16.gmra.mxu0 %v1849
        %v1873 = vpop.f32.mrf.mxu0
        %v1874 = vadd.f32 %v1576, %v1873
        %v1875 = vpop.f32.mrf.mxu0
        %1876 = vdwg.mxu0
        %v1879 = vperm.slane %v1529, 0
        %v1880 = vperm.slane %v1530, 0
        %v1881 = vunpack.c.l.b16 %v1879
        %v1882 = vunpack.c.l.b16 %v1880
        %v1883 = vsel %vm1597, %v1882, %v1881
        %v1884 = vpack.c.b16 %v1883, %v1883
        %v1889 = vunpack.c.l.b16 %v1551
        %v1890 = vunpack.c.h.b16 %v1551
        %v1891 = vunpack.c.l.b16 %v1552
        %v1892 = vunpack.c.h.b16 %v1552
        %v1893 = vunpack.c.l.b16 %v1553
        %v1894 = vunpack.c.h.b16 %v1553
        %v1895 = vunpack.c.l.b16 %v1554
        %v1896 = vunpack.c.h.b16 %v1554
        %v1897 = vpack.c.b16 %v1891, %v1889
        %v1898 = vpack.c.b16 %v1892, %v1890
        %v1899 = vpack.c.b16 %v1895, %v1893
        %v1900 = vpack.c.b16 %v1896, %v1894
        %v1906 = vsel %vm1266, %v1884, 0
        %1908 = vmatpush.bf16.msra.mxu0 0
        %1909 = vmatpush.bf16.msra.mxu0 0
        %1910 = vmatpush.bf16.msra.mxu0 0
        %1911 = vmatpush.bf16.msra.mxu0 0
        %1912 = vmatpush.bf16.msra.mxu0 0
        %1913 = vmatpush.bf16.msra.mxu0 0
        %1914 = vmatpush.bf16.msra.mxu0 %v1899
        %1915 = vmatpush.bf16.msra.mxu0 %v1897
        %1916 = vmatmul.bf16.gmra.mxu0 %v1906
        %v1917 = vpop.f32.mrf.mxu0
        %v1918 = vadd.f32 %v1577, %v1917
        %v1919 = vpop.f32.mrf.mxu0
        %1920 = vdwg.mxu0
        %1921 = vmatpush.bf16.msra.mxu0 0
        %1922 = vmatpush.bf16.msra.mxu0 0
        %1923 = vmatpush.bf16.msra.mxu0 0
        %1924 = vmatpush.bf16.msra.mxu0 0
        %1925 = vmatpush.bf16.msra.mxu0 0
        %1926 = vmatpush.bf16.msra.mxu0 0
        %1927 = vmatpush.bf16.msra.mxu0 %v1900
        %1928 = vmatpush.bf16.msra.mxu0 %v1898
        %1929 = vmatmul.bf16.gmra.mxu0 %v1906
        %v1930 = vpop.f32.mrf.mxu0
        %v1931 = vadd.f32 %v1578, %v1930
        %v1932 = vpop.f32.mrf.mxu0
        %1933 = vdwg.mxu0
        %v1934 = vmax.f32 %v1633, 0.0
        %v1935 = vmax.f32 %v1646, 0.0
        %v1936 = vmax.f32 %v1690, 0.0
        %v1937 = vmax.f32 %v1703, 0.0
        %v1938 = vmax.f32 %v1747, 0.0
        %v1939 = vmax.f32 %v1760, 0.0
        %v1940 = vmax.f32 %v1804, 0.0
        %v1941 = vmax.f32 %v1817, 0.0
        %v1942 = vmax.f32 %v1861, 0.0
        %v1943 = vmax.f32 %v1874, 0.0
        %v1944 = vmax.f32 %v1918, 0.0
        %v1945 = vmax.f32 %v1931, 0.0
        %v1946 = vpack.c.bf16 %v1935, %v1934
        %v1947 = vpack.c.bf16 %v1937, %v1936
        %v1948 = vpack.c.bf16 %v1939, %v1938
        %v1949 = vpack.c.bf16 %v1941, %v1940
        %v1950 = vpack.c.bf16 %v1943, %v1942
        %v1951 = vpack.c.bf16 %v1945, %v1944
        %v1952 = vld [vmem:[%s361] sm:$0xf]
        %v1953 = vld [vmem:[%s361 + $0x4] sm:$0xf]
        %v1954 = vld [vmem:[%s361 + $0x8] sm:$0xf]
        %v1955 = vld [vmem:[%s361 + $0xc] sm:$0xf]
        %v1956 = vld [vmem:[%s361 + $0x10] sm:$0xf]
        %v1957 = vld [vmem:[%s361 + $0x14] sm:$0xf]
        %v1958 = vld [vmem:[%s361 + $0x18] sm:$0xf]
        %v1959 = vld [vmem:[%s361 + $0x1c] sm:$0xf]
        %v1960 = vld [vmem:[%s361 + $0x20] sm:$0xf]
        %v1961 = vld [vmem:[%s361 + $0x24] sm:$0xf]
        %v1962 = vld [vmem:[%s361 + $0x28] sm:$0xf]
        %v1963 = vld [vmem:[%s361 + $0x2c] sm:$0xf]
        %v1964 = vld [vmem:[%s361 + $0x30] sm:$0xf]
        %v1965 = vld [vmem:[%s361 + $0x34] sm:$0xf]
        %v1966 = vld [vmem:[%s361 + $0x38] sm:$0xf]
        %v1967 = vld [vmem:[%s361 + $0x3c] sm:$0xf]
        %v1968 = vld [vmem:[%s361 + $0x40] sm:$0xf]
        %v1969 = vld [vmem:[%s361 + $0x44] sm:$0xf]
        %v1970 = vld [vmem:[%s361 + $0x48] sm:$0xf]
        %v1971 = vld [vmem:[%s361 + $0x4c] sm:$0xf]
        %v1972 = vld [vmem:[%s361 + $0x50] sm:$0xf]
        %v1973 = vld [vmem:[%s361 + $0x54] sm:$0xf]
        %v1974 = vld [vmem:[%s361 + $0x58] sm:$0xf]
        %v1975 = vld [vmem:[%s361 + $0x5c] sm:$0xf]
        %v1976 = vld [vmem:[%s361 + $0x60] sm:$0xf]
        %v1977 = vld [vmem:[%s361 + $0x64] sm:$0xf]
        %v1978 = vld [vmem:[%s361 + $0x68] sm:$0xf]
        %v1979 = vld [vmem:[%s361 + $0x6c] sm:$0xf]
        %v1980 = vld [vmem:[%s361 + $0x70] sm:$0xf]
        %v1981 = vld [vmem:[%s361 + $0x74] sm:$0xf]
        %v1982 = vld [vmem:[%s361 + $0x78] sm:$0xf]
        %v1983 = vld [vmem:[%s361 + $0x7c] sm:$0xf]
        %v1984 = vld [vmem:[%s361 + $0x80] sm:$0xf]
        %v1985 = vld [vmem:[%s361 + $0x84] sm:$0xf]
        %v1986 = vld [vmem:[%s361 + $0x88] sm:$0xf]
        %v1987 = vld [vmem:[%s361 + $0x8c] sm:$0xf]
        %v1988 = vld [vmem:[%s361 + $0x90] sm:$0xf]
        %v1989 = vld [vmem:[%s361 + $0x94] sm:$0xf]
        %v1990 = vld [vmem:[%s361 + $0x98] sm:$0xf]
        %v1991 = vld [vmem:[%s361 + $0x9c] sm:$0xf]
        %v1992 = vld [vmem:[%s361 + $0xa0] sm:$0xf]
        %v1993 = vld [vmem:[%s361 + $0xa4] sm:$0xf]
        %v1994 = vld [vmem:[%s361 + $0xa8] sm:$0xf]
        %v1995 = vld [vmem:[%s361 + $0xac] sm:$0xf]
        %v1996 = vld [vmem:[%s361 + $0xb0] sm:$0xf]
        %v1997 = vld [vmem:[%s361 + $0xb4] sm:$0xf]
        %v1998 = vld [vmem:[%s361 + $0xb8] sm:$0xf]
        %v1999 = vld [vmem:[%s361 + $0xbc] sm:$0xf]
        %v2000 = vld [vmem:[%s361 + $0xc0] sm:$0xf]
        %v2001 = vld [vmem:[%s361 + $0xc4] sm:$0xf]
        %v2002 = vld [vmem:[%s361 + $0xc8] sm:$0xf]
        %v2003 = vld [vmem:[%s361 + $0xcc] sm:$0xf]
        %v2004 = vld [vmem:[%s361 + $0xd0] sm:$0xf]
        %v2005 = vld [vmem:[%s361 + $0xd4] sm:$0xf]
        %v2006 = vld [vmem:[%s361 + $0xd8] sm:$0xf]
        %v2007 = vld [vmem:[%s361 + $0xdc] sm:$0xf]
        %v2008 = vld [vmem:[%s361 + $0xe0] sm:$0xf]
        %v2009 = vld [vmem:[%s361 + $0xe4] sm:$0xf]
        %v2010 = vld [vmem:[%s361 + $0xe8] sm:$0xf]
        %v2011 = vld [vmem:[%s361 + $0xec] sm:$0xf]
        %v2012 = vld [vmem:[%s361 + $0xf0] sm:$0xf]
        %v2013 = vld [vmem:[%s361 + $0xf4] sm:$0xf]
        %v2014 = vld [vmem:[%s361 + $0xf8] sm:$0xf]
        %v2015 = vld [vmem:[%s361 + $0xfc] sm:$0xf]
        %v2016 = vld [vmem:[%s361 + $0x100] sm:$0xf]
        %v2017 = vld [vmem:[%s361 + $0x104] sm:$0xf]
        %v2018 = vld [vmem:[%s361 + $0x108] sm:$0xf]
        %v2019 = vld [vmem:[%s361 + $0x10c] sm:$0xf]
        %v2020 = vld [vmem:[%s361 + $0x110] sm:$0xf]
        %v2021 = vld [vmem:[%s361 + $0x114] sm:$0xf]
        %v2022 = vld [vmem:[%s361 + $0x118] sm:$0xf]
        %v2023 = vld [vmem:[%s361 + $0x11c] sm:$0xf]
        %v2024 = vld [vmem:[%s361 + $0x120] sm:$0xf]
        %v2025 = vld [vmem:[%s361 + $0x124] sm:$0xf]
        %v2026 = vld [vmem:[%s361 + $0x128] sm:$0xf]
        %v2027 = vld [vmem:[%s361 + $0x12c] sm:$0xf]
        %v2028 = vld [vmem:[%s361 + $0x130] sm:$0xf]
        %v2029 = vld [vmem:[%s361 + $0x134] sm:$0xf]
        %v2030 = vld [vmem:[%s361 + $0x138] sm:$0xf]
        %v2031 = vld [vmem:[%s361 + $0x13c] sm:$0xf]
        %v2032 = vld [vmem:[%s361 + $0x140] sm:$0xf]
        %v2033 = vld [vmem:[%s361 + $0x144] sm:$0xf]
        %v2034 = vld [vmem:[%s361 + $0x148] sm:$0xf]
        %v2035 = vld [vmem:[%s361 + $0x14c] sm:$0xf]
        %v2036 = vld [vmem:[%s361 + $0x150] sm:$0xf]
        %v2037 = vld [vmem:[%s361 + $0x154] sm:$0xf]
        %v2038 = vld [vmem:[%s361 + $0x158] sm:$0xf]
        %v2039 = vld [vmem:[%s361 + $0x15c] sm:$0xf]
        %v2040 = vld [vmem:[%s361 + $0x160] sm:$0xf]
        %v2041 = vld [vmem:[%s361 + $0x164] sm:$0xf]
        %v2042 = vld [vmem:[%s361 + $0x168] sm:$0xf]
        %v2043 = vld [vmem:[%s361 + $0x16c] sm:$0xf]
        %v2044 = vld [vmem:[%s361 + $0x170] sm:$0xf]
        %v2045 = vld [vmem:[%s361 + $0x174] sm:$0xf]
        %v2046 = vld [vmem:[%s361 + $0x178] sm:$0xf]
        %v2047 = vld [vmem:[%s361 + $0x17c] sm:$0xf]
        %v2048 = vld [vmem:[%s361 + $0x180] sm:$0xf]
        %v2049 = vld [vmem:[%s361 + $0x184] sm:$0xf]
        %v2050 = vld [vmem:[%s361 + $0x188] sm:$0xf]
        %v2051 = vld [vmem:[%s361 + $0x18c] sm:$0xf]
        %v2052 = vld [vmem:[%s361 + $0x190] sm:$0xf]
        %v2053 = vld [vmem:[%s361 + $0x194] sm:$0xf]
        %v2054 = vld [vmem:[%s361 + $0x198] sm:$0xf]
        %v2055 = vld [vmem:[%s361 + $0x19c] sm:$0xf]
        %v2056 = vld [vmem:[%s361 + $0x1a0] sm:$0xf]
        %v2057 = vld [vmem:[%s361 + $0x1a4] sm:$0xf]
        %v2058 = vld [vmem:[%s361 + $0x1a8] sm:$0xf]
        %v2059 = vld [vmem:[%s361 + $0x1ac] sm:$0xf]
        %v2060 = vld [vmem:[%s361 + $0x1b0] sm:$0xf]
        %v2061 = vld [vmem:[%s361 + $0x1b4] sm:$0xf]
        %v2062 = vld [vmem:[%s361 + $0x1b8] sm:$0xf]
        %v2063 = vld [vmem:[%s361 + $0x1bc] sm:$0xf]
        %v2064 = vld [vmem:[%s361 + $0x1c0] sm:$0xf]
        %v2065 = vld [vmem:[%s361 + $0x1c4] sm:$0xf]
        %v2066 = vld [vmem:[%s361 + $0x1c8] sm:$0xf]
        %v2067 = vld [vmem:[%s361 + $0x1cc] sm:$0xf]
        %v2068 = vld [vmem:[%s361 + $0x1d0] sm:$0xf]
        %v2069 = vld [vmem:[%s361 + $0x1d4] sm:$0xf]
        %v2070 = vld [vmem:[%s361 + $0x1d8] sm:$0xf]
        %v2071 = vld [vmem:[%s361 + $0x1dc] sm:$0xf]
        %v2072 = vld [vmem:[%s361 + $0x1e0] sm:$0xf]
        %v2073 = vld [vmem:[%s361 + $0x1e4] sm:$0xf]
        %v2074 = vld [vmem:[%s361 + $0x1e8] sm:$0xf]
        %v2075 = vld [vmem:[%s361 + $0x1ec] sm:$0xf]
        %v2076 = vld [vmem:[%s361 + $0x1f0] sm:$0xf]
        %v2077 = vld [vmem:[%s361 + $0x1f4] sm:$0xf]
        %v2078 = vld [vmem:[%s361 + $0x1f8] sm:$0xf]
        %v2079 = vld [vmem:[%s361 + $0x1fc] sm:$0xf]
        %v2080 = vld [vmem:[%s361 + $0x200] sm:$0xf]
        %v2081 = vld [vmem:[%s361 + $0x204] sm:$0xf]
        %v2082 = vld [vmem:[%s361 + $0x208] sm:$0xf]
        %v2083 = vld [vmem:[%s361 + $0x20c] sm:$0xf]
        %v2084 = vld [vmem:[%s361 + $0x210] sm:$0xf]
        %v2085 = vld [vmem:[%s361 + $0x214] sm:$0xf]
        %v2086 = vld [vmem:[%s361 + $0x218] sm:$0xf]
        %v2087 = vld [vmem:[%s361 + $0x21c] sm:$0xf]
        %v2088 = vld [vmem:[%s361 + $0x220] sm:$0xf]
        %v2089 = vld [vmem:[%s361 + $0x224] sm:$0xf]
        %v2090 = vld [vmem:[%s361 + $0x228] sm:$0xf]
        %v2091 = vld [vmem:[%s361 + $0x22c] sm:$0xf]
        %v2092 = vld [vmem:[%s361 + $0x230] sm:$0xf]
        %v2093 = vld [vmem:[%s361 + $0x234] sm:$0xf]
        %v2094 = vld [vmem:[%s361 + $0x238] sm:$0xf]
        %v2095 = vld [vmem:[%s361 + $0x23c] sm:$0xf]
        %v2096 = vld [vmem:[%s361 + $0x240] sm:$0xf]
        %v2097 = vld [vmem:[%s361 + $0x244] sm:$0xf]
        %v2098 = vld [vmem:[%s361 + $0x248] sm:$0xf]
        %v2099 = vld [vmem:[%s361 + $0x24c] sm:$0xf]
        %v2100 = vld [vmem:[%s361 + $0x250] sm:$0xf]
        %v2101 = vld [vmem:[%s361 + $0x254] sm:$0xf]
        %v2102 = vld [vmem:[%s361 + $0x258] sm:$0xf]
        %v2103 = vld [vmem:[%s361 + $0x25c] sm:$0xf]
        %v2104 = vld [vmem:[%s361 + $0x260] sm:$0xf]
        %v2105 = vld [vmem:[%s361 + $0x264] sm:$0xf]
        %v2106 = vld [vmem:[%s361 + $0x268] sm:$0xf]
        %v2107 = vld [vmem:[%s361 + $0x26c] sm:$0xf]
        %v2108 = vld [vmem:[%s361 + $0x270] sm:$0xf]
        %v2109 = vld [vmem:[%s361 + $0x274] sm:$0xf]
        %v2110 = vld [vmem:[%s361 + $0x278] sm:$0xf]
        %v2111 = vld [vmem:[%s361 + $0x27c] sm:$0xf]
        %v2112 = vld [vmem:[%s361 + $0x280] sm:$0xf]
        %v2113 = vld [vmem:[%s361 + $0x284] sm:$0xf]
        %v2114 = vld [vmem:[%s361 + $0x288] sm:$0xf]
        %v2115 = vld [vmem:[%s361 + $0x28c] sm:$0xf]
        %v2116 = vld [vmem:[%s361 + $0x290] sm:$0xf]
        %v2117 = vld [vmem:[%s361 + $0x294] sm:$0xf]
        %v2118 = vld [vmem:[%s361 + $0x298] sm:$0xf]
        %v2119 = vld [vmem:[%s361 + $0x29c] sm:$0xf]
        %v2120 = vld [vmem:[%s361 + $0x2a0] sm:$0xf]
        %v2121 = vld [vmem:[%s361 + $0x2a4] sm:$0xf]
        %v2122 = vld [vmem:[%s361 + $0x2a8] sm:$0xf]
        %v2123 = vld [vmem:[%s361 + $0x2ac] sm:$0xf]
        %v2124 = vld [vmem:[%s361 + $0x2b0] sm:$0xf]
        %v2125 = vld [vmem:[%s361 + $0x2b4] sm:$0xf]
        %v2126 = vld [vmem:[%s361 + $0x2b8] sm:$0xf]
        %v2127 = vld [vmem:[%s361 + $0x2bc] sm:$0xf]
        %v2128 = vld [vmem:[%s361 + $0x2c0] sm:$0xf]
        %v2129 = vld [vmem:[%s361 + $0x2c4] sm:$0xf]
        %v2130 = vld [vmem:[%s361 + $0x2c8] sm:$0xf]
        %v2131 = vld [vmem:[%s361 + $0x2cc] sm:$0xf]
        %v2132 = vld [vmem:[%s361 + $0x2d0] sm:$0xf]
        %v2133 = vld [vmem:[%s361 + $0x2d4] sm:$0xf]
        %v2134 = vld [vmem:[%s361 + $0x2d8] sm:$0xf]
        %v2135 = vld [vmem:[%s361 + $0x2dc] sm:$0xf]
        %v2136 = vld [vmem:[%s361 + $0x2e0] sm:$0xf]
        %v2137 = vld [vmem:[%s361 + $0x2e4] sm:$0xf]
        %v2138 = vld [vmem:[%s361 + $0x2e8] sm:$0xf]
        %v2139 = vld [vmem:[%s361 + $0x2ec] sm:$0xf]
        %v2140 = vld [vmem:[%s361 + $0x2f0] sm:$0xf]
        %v2141 = vld [vmem:[%s361 + $0x2f4] sm:$0xf]
        %v2142 = vld [vmem:[%s361 + $0x2f8] sm:$0xf]
        %v2143 = vld [vmem:[%s361 + $0x2fc] sm:$0xf]
        %v2144 = vld [vmem:[%s366] sm:$0x1]
        %v2145 = vld [vmem:[%s366 + $0x1] sm:$0x1]
        %v2146 = vld [vmem:[%s366 + $0x2] sm:$0x1]
        %v2147 = vld [vmem:[%s366 + $0x3] sm:$0x1]
        %v2148 = vld [vmem:[%s366 + $0x4] sm:$0x1]
        %v2149 = vld [vmem:[%s366 + $0x5] sm:$0x1]
        %v2156 = vperm.slane %v2144, 0
        %v2157 = vperm.slane %v2145, 0
        %v2158 = vperm.slane %v2146, 0
        %v2159 = vperm.slane %v2147, 0
        %v2160 = vperm.slane %v2148, 0
        %v2161 = vperm.slane %v2149, 0
        %v2169 = vunpack.c.l.b16 %v1946
        %v2170 = vunpack.c.h.b16 %v1946
        %v2171 = vpack.c.b16 %v2169, %v2169
        %v2172 = vpack.c.b16 %v2170, %v2170
        %v2207 = vunpack.c.l.b16 %v1952
        %v2208 = vunpack.c.l.b16 %v1953
        %v2209 = vunpack.c.l.b16 %v1954
        %v2210 = vunpack.c.l.b16 %v1955
        %v2211 = vunpack.c.l.b16 %v1956
        %v2212 = vunpack.c.l.b16 %v1957
        %v2213 = vunpack.c.l.b16 %v1958
        %v2214 = vunpack.c.l.b16 %v1959
        %v2215 = vunpack.c.l.b16 %v1960
        %v2216 = vunpack.c.l.b16 %v1961
        %v2217 = vunpack.c.l.b16 %v1962
        %v2218 = vunpack.c.l.b16 %v1963
        %v2219 = vunpack.c.l.b16 %v1964
        %v2220 = vunpack.c.l.b16 %v1965
        %v2221 = vunpack.c.l.b16 %v1966
        %v2222 = vunpack.c.l.b16 %v1967
        %v2223 = vunpack.c.l.b16 %v1968
        %v2224 = vunpack.c.l.b16 %v1969
        %v2225 = vunpack.c.l.b16 %v1970
        %v2226 = vunpack.c.l.b16 %v1971
        %v2227 = vunpack.c.l.b16 %v1972
        %v2228 = vunpack.c.l.b16 %v1973
        %v2229 = vunpack.c.l.b16 %v1974
        %v2230 = vunpack.c.l.b16 %v1975
        %v2231 = vunpack.c.l.b16 %v1976
        %v2232 = vunpack.c.l.b16 %v1977
        %v2233 = vunpack.c.l.b16 %v1978
        %v2234 = vunpack.c.l.b16 %v1979
        %v2235 = vunpack.c.l.b16 %v1980
        %v2236 = vunpack.c.l.b16 %v1981
        %v2237 = vunpack.c.l.b16 %v1982
        %v2238 = vunpack.c.l.b16 %v1983
        %v2239 = vpack.c.b16 %v2208, %v2207
        %v2240 = vpack.c.b16 %v2210, %v2209
        %v2241 = vpack.c.b16 %v2212, %v2211
        %v2242 = vpack.c.b16 %v2214, %v2213
        %v2243 = vpack.c.b16 %v2216, %v2215
        %v2244 = vpack.c.b16 %v2218, %v2217
        %v2245 = vpack.c.b16 %v2220, %v2219
        %v2246 = vpack.c.b16 %v2222, %v2221
        %v2247 = vpack.c.b16 %v2224, %v2223
        %v2248 = vpack.c.b16 %v2226, %v2225
        %v2249 = vpack.c.b16 %v2228, %v2227
        %v2250 = vpack.c.b16 %v2230, %v2229
        %v2251 = vpack.c.b16 %v2232, %v2231
        %v2252 = vpack.c.b16 %v2234, %v2233
        %v2253 = vpack.c.b16 %v2236, %v2235
        %v2254 = vpack.c.b16 %v2238, %v2237
        %2271 = vmatpush.bf16.msra.mxu0 %v2246
        %2272 = vmatpush.bf16.msra.mxu0 %v2245
        %2273 = vmatpush.bf16.msra.mxu0 %v2244
        %2274 = vmatpush.bf16.msra.mxu0 %v2243
        %2275 = vmatpush.bf16.msra.mxu0 %v2242
        %2276 = vmatpush.bf16.msra.mxu0 %v2241
        %2277 = vmatpush.bf16.msra.mxu0 %v2240
        %2278 = vmatpush.bf16.msra.mxu0 %v2239
        %2279 = vmatmul.bf16.gmra.mxu0 %v2171
        %v2280 = vpop.f32.mrf.mxu0
        %v2281 = vadd.f32 %v2156, %v2280
        %v2282 = vpop.f32.mrf.mxu0
        %2283 = vdwg.mxu0
        %2284 = vmatpush.bf16.msra.mxu0 %v2254
        %2285 = vmatpush.bf16.msra.mxu0 %v2253
        %2286 = vmatpush.bf16.msra.mxu0 %v2252
        %2287 = vmatpush.bf16.msra.mxu0 %v2251
        %2288 = vmatpush.bf16.msra.mxu0 %v2250
        %2289 = vmatpush.bf16.msra.mxu0 %v2249
        %2290 = vmatpush.bf16.msra.mxu0 %v2248
        %2291 = vmatpush.bf16.msra.mxu0 %v2247
        %2292 = vmatmul.bf16.gmra.mxu0 %v2172
        %v2293 = vpop.f32.mrf.mxu0
        %v2294 = vadd.f32 %v2281, %v2293
        %v2295 = vpop.f32.mrf.mxu0
        %2296 = vdwg.mxu0
        %v2298 = vunpack.c.l.b16 %v1947
        %v2299 = vunpack.c.h.b16 %v1947
        %v2300 = vpack.c.b16 %v2298, %v2298
        %v2301 = vpack.c.b16 %v2299, %v2299
        %v2336 = vunpack.c.l.b16 %v1984
        %v2337 = vunpack.c.l.b16 %v1985
        %v2338 = vunpack.c.l.b16 %v1986
        %v2339 = vunpack.c.l.b16 %v1987
        %v2340 = vunpack.c.l.b16 %v1988
        %v2341 = vunpack.c.l.b16 %v1989
        %v2342 = vunpack.c.l.b16 %v1990
        %v2343 = vunpack.c.l.b16 %v1991
        %v2344 = vunpack.c.l.b16 %v1992
        %v2345 = vunpack.c.l.b16 %v1993
        %v2346 = vunpack.c.l.b16 %v1994
        %v2347 = vunpack.c.l.b16 %v1995
        %v2348 = vunpack.c.l.b16 %v1996
        %v2349 = vunpack.c.l.b16 %v1997
        %v2350 = vunpack.c.l.b16 %v1998
        %v2351 = vunpack.c.l.b16 %v1999
        %v2352 = vunpack.c.l.b16 %v2000
        %v2353 = vunpack.c.l.b16 %v2001
        %v2354 = vunpack.c.l.b16 %v2002
        %v2355 = vunpack.c.l.b16 %v2003
        %v2356 = vunpack.c.l.b16 %v2004
        %v2357 = vunpack.c.l.b16 %v2005
        %v2358 = vunpack.c.l.b16 %v2006
        %v2359 = vunpack.c.l.b16 %v2007
        %v2360 = vunpack.c.l.b16 %v2008
        %v2361 = vunpack.c.l.b16 %v2009
        %v2362 = vunpack.c.l.b16 %v2010
        %v2363 = vunpack.c.l.b16 %v2011
        %v2364 = vunpack.c.l.b16 %v2012
        %v2365 = vunpack.c.l.b16 %v2013
        %v2366 = vunpack.c.l.b16 %v2014
        %v2367 = vunpack.c.l.b16 %v2015
        %v2368 = vpack.c.b16 %v2337, %v2336
        %v2369 = vpack.c.b16 %v2339, %v2338
        %v2370 = vpack.c.b16 %v2341, %v2340
        %v2371 = vpack.c.b16 %v2343, %v2342
        %v2372 = vpack.c.b16 %v2345, %v2344
        %v2373 = vpack.c.b16 %v2347, %v2346
        %v2374 = vpack.c.b16 %v2349, %v2348
        %v2375 = vpack.c.b16 %v2351, %v2350
        %v2376 = vpack.c.b16 %v2353, %v2352
        %v2377 = vpack.c.b16 %v2355, %v2354
        %v2378 = vpack.c.b16 %v2357, %v2356
        %v2379 = vpack.c.b16 %v2359, %v2358
        %v2380 = vpack.c.b16 %v2361, %v2360
        %v2381 = vpack.c.b16 %v2363, %v2362
        %v2382 = vpack.c.b16 %v2365, %v2364
        %v2383 = vpack.c.b16 %v2367, %v2366
        %2400 = vmatpush.bf16.msra.mxu0 %v2375
        %2401 = vmatpush.bf16.msra.mxu0 %v2374
        %2402 = vmatpush.bf16.msra.mxu0 %v2373
        %2403 = vmatpush.bf16.msra.mxu0 %v2372
        %2404 = vmatpush.bf16.msra.mxu0 %v2371
        %2405 = vmatpush.bf16.msra.mxu0 %v2370
        %2406 = vmatpush.bf16.msra.mxu0 %v2369
        %2407 = vmatpush.bf16.msra.mxu0 %v2368
        %2408 = vmatmul.bf16.gmra.mxu0 %v2300
        %v2409 = vpop.f32.mrf.mxu0
        %v2410 = vadd.f32 %v2157, %v2409
        %v2411 = vpop.f32.mrf.mxu0
        %2412 = vdwg.mxu0
        %2413 = vmatpush.bf16.msra.mxu0 %v2383
        %2414 = vmatpush.bf16.msra.mxu0 %v2382
        %2415 = vmatpush.bf16.msra.mxu0 %v2381
        %2416 = vmatpush.bf16.msra.mxu0 %v2380
        %2417 = vmatpush.bf16.msra.mxu0 %v2379
        %2418 = vmatpush.bf16.msra.mxu0 %v2378
        %2419 = vmatpush.bf16.msra.mxu0 %v2377
        %2420 = vmatpush.bf16.msra.mxu0 %v2376
        %2421 = vmatmul.bf16.gmra.mxu0 %v2301
        %v2422 = vpop.f32.mrf.mxu0
        %v2423 = vadd.f32 %v2410, %v2422
        %v2424 = vpop.f32.mrf.mxu0
        %2425 = vdwg.mxu0
        %v2427 = vunpack.c.l.b16 %v1948
        %v2428 = vunpack.c.h.b16 %v1948
        %v2429 = vpack.c.b16 %v2427, %v2427
        %v2430 = vpack.c.b16 %v2428, %v2428
        %v2465 = vunpack.c.l.b16 %v2016
        %v2466 = vunpack.c.l.b16 %v2017
        %v2467 = vunpack.c.l.b16 %v2018
        %v2468 = vunpack.c.l.b16 %v2019
        %v2469 = vunpack.c.l.b16 %v2020
        %v2470 = vunpack.c.l.b16 %v2021
        %v2471 = vunpack.c.l.b16 %v2022
        %v2472 = vunpack.c.l.b16 %v2023
        %v2473 = vunpack.c.l.b16 %v2024
        %v2474 = vunpack.c.l.b16 %v2025
        %v2475 = vunpack.c.l.b16 %v2026
        %v2476 = vunpack.c.l.b16 %v2027
        %v2477 = vunpack.c.l.b16 %v2028
        %v2478 = vunpack.c.l.b16 %v2029
        %v2479 = vunpack.c.l.b16 %v2030
        %v2480 = vunpack.c.l.b16 %v2031
        %v2481 = vunpack.c.l.b16 %v2032
        %v2482 = vunpack.c.l.b16 %v2033
        %v2483 = vunpack.c.l.b16 %v2034
        %v2484 = vunpack.c.l.b16 %v2035
        %v2485 = vunpack.c.l.b16 %v2036
        %v2486 = vunpack.c.l.b16 %v2037
        %v2487 = vunpack.c.l.b16 %v2038
        %v2488 = vunpack.c.l.b16 %v2039
        %v2489 = vunpack.c.l.b16 %v2040
        %v2490 = vunpack.c.l.b16 %v2041
        %v2491 = vunpack.c.l.b16 %v2042
        %v2492 = vunpack.c.l.b16 %v2043
        %v2493 = vunpack.c.l.b16 %v2044
        %v2494 = vunpack.c.l.b16 %v2045
        %v2495 = vunpack.c.l.b16 %v2046
        %v2496 = vunpack.c.l.b16 %v2047
        %v2497 = vpack.c.b16 %v2466, %v2465
        %v2498 = vpack.c.b16 %v2468, %v2467
        %v2499 = vpack.c.b16 %v2470, %v2469
        %v2500 = vpack.c.b16 %v2472, %v2471
        %v2501 = vpack.c.b16 %v2474, %v2473
        %v2502 = vpack.c.b16 %v2476, %v2475
        %v2503 = vpack.c.b16 %v2478, %v2477
        %v2504 = vpack.c.b16 %v2480, %v2479
        %v2505 = vpack.c.b16 %v2482, %v2481
        %v2506 = vpack.c.b16 %v2484, %v2483
        %v2507 = vpack.c.b16 %v2486, %v2485
        %v2508 = vpack.c.b16 %v2488, %v2487
        %v2509 = vpack.c.b16 %v2490, %v2489
        %v2510 = vpack.c.b16 %v2492, %v2491
        %v2511 = vpack.c.b16 %v2494, %v2493
        %v2512 = vpack.c.b16 %v2496, %v2495
        %2529 = vmatpush.bf16.msra.mxu0 %v2504
        %2530 = vmatpush.bf16.msra.mxu0 %v2503
        %2531 = vmatpush.bf16.msra.mxu0 %v2502
        %2532 = vmatpush.bf16.msra.mxu0 %v2501
        %2533 = vmatpush.bf16.msra.mxu0 %v2500
        %2534 = vmatpush.bf16.msra.mxu0 %v2499
        %2535 = vmatpush.bf16.msra.mxu0 %v2498
        %2536 = vmatpush.bf16.msra.mxu0 %v2497
        %2537 = vmatmul.bf16.gmra.mxu0 %v2429
        %v2538 = vpop.f32.mrf.mxu0
        %v2539 = vadd.f32 %v2158, %v2538
        %v2540 = vpop.f32.mrf.mxu0
        %2541 = vdwg.mxu0
        %2542 = vmatpush.bf16.msra.mxu0 %v2512
        %2543 = vmatpush.bf16.msra.mxu0 %v2511
        %2544 = vmatpush.bf16.msra.mxu0 %v2510
        %2545 = vmatpush.bf16.msra.mxu0 %v2509
        %2546 = vmatpush.bf16.msra.mxu0 %v2508
        %2547 = vmatpush.bf16.msra.mxu0 %v2507
        %2548 = vmatpush.bf16.msra.mxu0 %v2506
        %2549 = vmatpush.bf16.msra.mxu0 %v2505
        %2550 = vmatmul.bf16.gmra.mxu0 %v2430
        %v2551 = vpop.f32.mrf.mxu0
        %v2552 = vadd.f32 %v2539, %v2551
        %v2553 = vpop.f32.mrf.mxu0
        %2554 = vdwg.mxu0
        %v2556 = vunpack.c.l.b16 %v1949
        %v2557 = vunpack.c.h.b16 %v1949
        %v2558 = vpack.c.b16 %v2556, %v2556
        %v2559 = vpack.c.b16 %v2557, %v2557
        %v2594 = vunpack.c.l.b16 %v2048
        %v2595 = vunpack.c.l.b16 %v2049
        %v2596 = vunpack.c.l.b16 %v2050
        %v2597 = vunpack.c.l.b16 %v2051
        %v2598 = vunpack.c.l.b16 %v2052
        %v2599 = vunpack.c.l.b16 %v2053
        %v2600 = vunpack.c.l.b16 %v2054
        %v2601 = vunpack.c.l.b16 %v2055
        %v2602 = vunpack.c.l.b16 %v2056
        %v2603 = vunpack.c.l.b16 %v2057
        %v2604 = vunpack.c.l.b16 %v2058
        %v2605 = vunpack.c.l.b16 %v2059
        %v2606 = vunpack.c.l.b16 %v2060
        %v2607 = vunpack.c.l.b16 %v2061
        %v2608 = vunpack.c.l.b16 %v2062
        %v2609 = vunpack.c.l.b16 %v2063
        %v2610 = vunpack.c.l.b16 %v2064
        %v2611 = vunpack.c.l.b16 %v2065
        %v2612 = vunpack.c.l.b16 %v2066
        %v2613 = vunpack.c.l.b16 %v2067
        %v2614 = vunpack.c.l.b16 %v2068
        %v2615 = vunpack.c.l.b16 %v2069
        %v2616 = vunpack.c.l.b16 %v2070
        %v2617 = vunpack.c.l.b16 %v2071
        %v2618 = vunpack.c.l.b16 %v2072
        %v2619 = vunpack.c.l.b16 %v2073
        %v2620 = vunpack.c.l.b16 %v2074
        %v2621 = vunpack.c.l.b16 %v2075
        %v2622 = vunpack.c.l.b16 %v2076
        %v2623 = vunpack.c.l.b16 %v2077
        %v2624 = vunpack.c.l.b16 %v2078
        %v2625 = vunpack.c.l.b16 %v2079
        %v2626 = vpack.c.b16 %v2595, %v2594
        %v2627 = vpack.c.b16 %v2597, %v2596
        %v2628 = vpack.c.b16 %v2599, %v2598
        %v2629 = vpack.c.b16 %v2601, %v2600
        %v2630 = vpack.c.b16 %v2603, %v2602
        %v2631 = vpack.c.b16 %v2605, %v2604
        %v2632 = vpack.c.b16 %v2607, %v2606
        %v2633 = vpack.c.b16 %v2609, %v2608
        %v2634 = vpack.c.b16 %v2611, %v2610
        %v2635 = vpack.c.b16 %v2613, %v2612
        %v2636 = vpack.c.b16 %v2615, %v2614
        %v2637 = vpack.c.b16 %v2617, %v2616
        %v2638 = vpack.c.b16 %v2619, %v2618
        %v2639 = vpack.c.b16 %v2621, %v2620
        %v2640 = vpack.c.b16 %v2623, %v2622
        %v2641 = vpack.c.b16 %v2625, %v2624
        %2658 = vmatpush.bf16.msra.mxu0 %v2633
        %2659 = vmatpush.bf16.msra.mxu0 %v2632
        %2660 = vmatpush.bf16.msra.mxu0 %v2631
        %2661 = vmatpush.bf16.msra.mxu0 %v2630
        %2662 = vmatpush.bf16.msra.mxu0 %v2629
        %2663 = vmatpush.bf16.msra.mxu0 %v2628
        %2664 = vmatpush.bf16.msra.mxu0 %v2627
        %2665 = vmatpush.bf16.msra.mxu0 %v2626
        %2666 = vmatmul.bf16.gmra.mxu0 %v2558
        %v2667 = vpop.f32.mrf.mxu0
        %v2668 = vadd.f32 %v2159, %v2667
        %v2669 = vpop.f32.mrf.mxu0
        %2670 = vdwg.mxu0
        %2671 = vmatpush.bf16.msra.mxu0 %v2641
        %2672 = vmatpush.bf16.msra.mxu0 %v2640
        %2673 = vmatpush.bf16.msra.mxu0 %v2639
        %2674 = vmatpush.bf16.msra.mxu0 %v2638
        %2675 = vmatpush.bf16.msra.mxu0 %v2637
        %2676 = vmatpush.bf16.msra.mxu0 %v2636
        %2677 = vmatpush.bf16.msra.mxu0 %v2635
        %2678 = vmatpush.bf16.msra.mxu0 %v2634
        %2679 = vmatmul.bf16.gmra.mxu0 %v2559
        %v2680 = vpop.f32.mrf.mxu0
        %v2681 = vadd.f32 %v2668, %v2680
        %v2682 = vpop.f32.mrf.mxu0
        %2683 = vdwg.mxu0
        %v2685 = vunpack.c.l.b16 %v1950
        %v2686 = vunpack.c.h.b16 %v1950
        %v2687 = vpack.c.b16 %v2685, %v2685
        %v2688 = vpack.c.b16 %v2686, %v2686
        %v2723 = vunpack.c.l.b16 %v2080
        %v2724 = vunpack.c.l.b16 %v2081
        %v2725 = vunpack.c.l.b16 %v2082
        %v2726 = vunpack.c.l.b16 %v2083
        %v2727 = vunpack.c.l.b16 %v2084
        %v2728 = vunpack.c.l.b16 %v2085
        %v2729 = vunpack.c.l.b16 %v2086
        %v2730 = vunpack.c.l.b16 %v2087
        %v2731 = vunpack.c.l.b16 %v2088
        %v2732 = vunpack.c.l.b16 %v2089
        %v2733 = vunpack.c.l.b16 %v2090
        %v2734 = vunpack.c.l.b16 %v2091
        %v2735 = vunpack.c.l.b16 %v2092
        %v2736 = vunpack.c.l.b16 %v2093
        %v2737 = vunpack.c.l.b16 %v2094
        %v2738 = vunpack.c.l.b16 %v2095
        %v2739 = vunpack.c.l.b16 %v2096
        %v2740 = vunpack.c.l.b16 %v2097
        %v2741 = vunpack.c.l.b16 %v2098
        %v2742 = vunpack.c.l.b16 %v2099
        %v2743 = vunpack.c.l.b16 %v2100
        %v2744 = vunpack.c.l.b16 %v2101
        %v2745 = vunpack.c.l.b16 %v2102
        %v2746 = vunpack.c.l.b16 %v2103
        %v2747 = vunpack.c.l.b16 %v2104
        %v2748 = vunpack.c.l.b16 %v2105
        %v2749 = vunpack.c.l.b16 %v2106
        %v2750 = vunpack.c.l.b16 %v2107
        %v2751 = vunpack.c.l.b16 %v2108
        %v2752 = vunpack.c.l.b16 %v2109
        %v2753 = vunpack.c.l.b16 %v2110
        %v2754 = vunpack.c.l.b16 %v2111
        %v2755 = vpack.c.b16 %v2724, %v2723
        %v2756 = vpack.c.b16 %v2726, %v2725
        %v2757 = vpack.c.b16 %v2728, %v2727
        %v2758 = vpack.c.b16 %v2730, %v2729
        %v2759 = vpack.c.b16 %v2732, %v2731
        %v2760 = vpack.c.b16 %v2734, %v2733
        %v2761 = vpack.c.b16 %v2736, %v2735
        %v2762 = vpack.c.b16 %v2738, %v2737
        %v2763 = vpack.c.b16 %v2740, %v2739
        %v2764 = vpack.c.b16 %v2742, %v2741
        %v2765 = vpack.c.b16 %v2744, %v2743
        %v2766 = vpack.c.b16 %v2746, %v2745
        %v2767 = vpack.c.b16 %v2748, %v2747
        %v2768 = vpack.c.b16 %v2750, %v2749
        %v2769 = vpack.c.b16 %v2752, %v2751
        %v2770 = vpack.c.b16 %v2754, %v2753
        %2787 = vmatpush.bf16.msra.mxu0 %v2762
        %2788 = vmatpush.bf16.msra.mxu0 %v2761
        %2789 = vmatpush.bf16.msra.mxu0 %v2760
        %2790 = vmatpush.bf16.msra.mxu0 %v2759
        %2791 = vmatpush.bf16.msra.mxu0 %v2758
        %2792 = vmatpush.bf16.msra.mxu0 %v2757
        %2793 = vmatpush.bf16.msra.mxu0 %v2756
        %2794 = vmatpush.bf16.msra.mxu0 %v2755
        %2795 = vmatmul.bf16.gmra.mxu0 %v2687
        %v2796 = vpop.f32.mrf.mxu0
        %v2797 = vadd.f32 %v2160, %v2796
        %v2798 = vpop.f32.mrf.mxu0
        %2799 = vdwg.mxu0
        %2800 = vmatpush.bf16.msra.mxu0 %v2770
        %2801 = vmatpush.bf16.msra.mxu0 %v2769
        %2802 = vmatpush.bf16.msra.mxu0 %v2768
        %2803 = vmatpush.bf16.msra.mxu0 %v2767
        %2804 = vmatpush.bf16.msra.mxu0 %v2766
        %2805 = vmatpush.bf16.msra.mxu0 %v2765
        %2806 = vmatpush.bf16.msra.mxu0 %v2764
        %2807 = vmatpush.bf16.msra.mxu0 %v2763
        %2808 = vmatmul.bf16.gmra.mxu0 %v2688
        %v2809 = vpop.f32.mrf.mxu0
        %v2810 = vadd.f32 %v2797, %v2809
        %v2811 = vpop.f32.mrf.mxu0
        %2812 = vdwg.mxu0
        %v2814 = vunpack.c.l.b16 %v1951
        %v2815 = vunpack.c.h.b16 %v1951
        %v2816 = vpack.c.b16 %v2814, %v2814
        %v2817 = vpack.c.b16 %v2815, %v2815
        %v2852 = vunpack.c.l.b16 %v2112
        %v2853 = vunpack.c.l.b16 %v2113
        %v2854 = vunpack.c.l.b16 %v2114
        %v2855 = vunpack.c.l.b16 %v2115
        %v2856 = vunpack.c.l.b16 %v2116
        %v2857 = vunpack.c.l.b16 %v2117
        %v2858 = vunpack.c.l.b16 %v2118
        %v2859 = vunpack.c.l.b16 %v2119
        %v2860 = vunpack.c.l.b16 %v2120
        %v2861 = vunpack.c.l.b16 %v2121
        %v2862 = vunpack.c.l.b16 %v2122
        %v2863 = vunpack.c.l.b16 %v2123
        %v2864 = vunpack.c.l.b16 %v2124
        %v2865 = vunpack.c.l.b16 %v2125
        %v2866 = vunpack.c.l.b16 %v2126
        %v2867 = vunpack.c.l.b16 %v2127
        %v2868 = vunpack.c.l.b16 %v2128
        %v2869 = vunpack.c.l.b16 %v2129
        %v2870 = vunpack.c.l.b16 %v2130
        %v2871 = vunpack.c.l.b16 %v2131
        %v2872 = vunpack.c.l.b16 %v2132
        %v2873 = vunpack.c.l.b16 %v2133
        %v2874 = vunpack.c.l.b16 %v2134
        %v2875 = vunpack.c.l.b16 %v2135
        %v2876 = vunpack.c.l.b16 %v2136
        %v2877 = vunpack.c.l.b16 %v2137
        %v2878 = vunpack.c.l.b16 %v2138
        %v2879 = vunpack.c.l.b16 %v2139
        %v2880 = vunpack.c.l.b16 %v2140
        %v2881 = vunpack.c.l.b16 %v2141
        %v2882 = vunpack.c.l.b16 %v2142
        %v2883 = vunpack.c.l.b16 %v2143
        %v2884 = vpack.c.b16 %v2853, %v2852
        %v2885 = vpack.c.b16 %v2855, %v2854
        %v2886 = vpack.c.b16 %v2857, %v2856
        %v2887 = vpack.c.b16 %v2859, %v2858
        %v2888 = vpack.c.b16 %v2861, %v2860
        %v2889 = vpack.c.b16 %v2863, %v2862
        %v2890 = vpack.c.b16 %v2865, %v2864
        %v2891 = vpack.c.b16 %v2867, %v2866
        %v2892 = vpack.c.b16 %v2869, %v2868
        %v2893 = vpack.c.b16 %v2871, %v2870
        %v2894 = vpack.c.b16 %v2873, %v2872
        %v2895 = vpack.c.b16 %v2875, %v2874
        %v2896 = vpack.c.b16 %v2877, %v2876
        %v2897 = vpack.c.b16 %v2879, %v2878
        %v2898 = vpack.c.b16 %v2881, %v2880
        %v2899 = vpack.c.b16 %v2883, %v2882
        %2916 = vmatpush.bf16.msra.mxu0 %v2891
        %2917 = vmatpush.bf16.msra.mxu0 %v2890
        %2918 = vmatpush.bf16.msra.mxu0 %v2889
        %2919 = vmatpush.bf16.msra.mxu0 %v2888
        %2920 = vmatpush.bf16.msra.mxu0 %v2887
        %2921 = vmatpush.bf16.msra.mxu0 %v2886
        %2922 = vmatpush.bf16.msra.mxu0 %v2885
        %2923 = vmatpush.bf16.msra.mxu0 %v2884
        %2924 = vmatmul.bf16.gmra.mxu0 %v2816
        %v2925 = vpop.f32.mrf.mxu0
        %v2926 = vadd.f32 %v2161, %v2925
        %v2927 = vpop.f32.mrf.mxu0
        %2928 = vdwg.mxu0
        %2929 = vmatpush.bf16.msra.mxu0 %v2899
        %2930 = vmatpush.bf16.msra.mxu0 %v2898
        %2931 = vmatpush.bf16.msra.mxu0 %v2897
        %2932 = vmatpush.bf16.msra.mxu0 %v2896
        %2933 = vmatpush.bf16.msra.mxu0 %v2895
        %2934 = vmatpush.bf16.msra.mxu0 %v2894
        %2935 = vmatpush.bf16.msra.mxu0 %v2893
        %2936 = vmatpush.bf16.msra.mxu0 %v2892
        %2937 = vmatmul.bf16.gmra.mxu0 %v2817
        %v2938 = vpop.f32.mrf.mxu0
        %v2939 = vadd.f32 %v2926, %v2938
        %v2940 = vpop.f32.mrf.mxu0
        %2941 = vdwg.mxu0
        %vm2942 = vcmask 123904
        %2943 = vst.msk [vmem:[%s329] sm:$0x3] %vm2942, %v2294
        %2944 = vst.msk [vmem:[%s329 + $0x2] sm:$0x3] %vm2942, %v2423
        %2945 = vst.msk [vmem:[%s329 + $0x4] sm:$0x3] %vm2942, %v2552
        %2946 = vst.msk [vmem:[%s329 + $0x6] sm:$0x3] %vm2942, %v2681
        %2947 = vst.msk [vmem:[%s329 + $0x8] sm:$0x3] %vm2942, %v2810
        %2948 = vst.msk [vmem:[%s329 + $0xa] sm:$0x3] %vm2942, %v2939
        %s2949 = sand.u32 %s184, 1
        %s2950 = scalar_lea.sflag [#allocation3], %s2949
        %s2951 = sand.u32 %s184, 1
        %s2952 = smul.addr %s2951, 12
        %s2953 = scalar_lea.vmem [#allocation2], %s2952
        // Predicated region
        $region45: #{tpu_custom_call.1} parent=43 // pred_check
          %p2954 = pneg %p194
        $region46: #{tpu_custom_call.1} parent=43 // pred_check_branch
          %2956 = sbr.rel (%p2954) target = $region48
        $region47: #{tpu_custom_call.1} parent=43 // pred_region
          %s2957 = smul.u32 6, %s20
          %2959 = vsyncadd %s2950, 0
          %s2960 = smul.addr %s2957, 2
          %s2961 = scalar_lea.hbm %s6, %s2960
          %s2962 = sshll.u32 %s2953, 4
          %s2963 = int_to_ptr.vmem [resolvable:$true] %s2962
          %s2964 = sshll.u32 %s2961, 4
          %s2965 = int_to_ptr.hbm [resolvable:$true] %s2964
          %2970 = dma.vmem_to_hbm [thread:$0]  %s2963, 192, %s2965, %s2950, 32, 32, 2
        $region48: #{tpu_custom_call.1} parent=43 // pred_fallthru
          _
      $region44: #{tpu_custom_call.1} parent=5 // pred_fallthru
        _
      %p2971 = scmp.le.s32.totalorder 2, %s15
      // Predicated region
      $region49: #{tpu_custom_call.1} parent=5 // pred_check
        %p2972 = pneg %p2971
      $region50: #{tpu_custom_call.1} parent=5 // pred_check_branch
        %2974 = sbr.rel (%p2972) target = $region52
      $region51: #{tpu_custom_call.1} parent=5 // pred_region
        %s2975 = ssub.s32 %s15, 2
        // Predicated region
        $region53: #{tpu_custom_call.1} parent=51 // pred_check
          %p2976 = pneg %p200
        $region54: #{tpu_custom_call.1} parent=51 // pred_check_branch
          %2978 = sbr.rel (%p2976) target = $region56
        $region55: #{tpu_custom_call.1} parent=51 // pred_region
          %s2979 = sand.u32 %s185, 1
          %s2980 = scalar_lea.sflag [#allocation3], %s2979
          %s2981 = sand.u32 %s185, 1
          %s2982 = smul.addr %s2981, 12
          %s2983 = scalar_lea.vmem [#allocation2], %s2982
          %2985 = dma.done %s2980, 192
        $region56: #{tpu_custom_call.1} parent=51 // pred_fallthru
          _
      $region52: #{tpu_custom_call.1} parent=5 // pred_fallthru
        _
    $region6: #{tpu_custom_call.1} parent=1 // loop_footer
      %s19 = sadd.s32 1, %s15
    $region7: #{tpu_custom_call.1} parent=1 // loop_footer_branch
      %14 = sbr.rel target = $region3
    $region8: #{tpu_custom_call.1} parent=1 // loop_exit
      _
    %2986 = vsyncpa [#allocation3], 1
    %s2987 = scalar_lea.sflag [#allocation3], 1
    %2988 = vsyncpa %s2987, 1

</llo_original>
